<compile_context>
chip_gen: v5e
topology: v5e:2x2
jax: 0.10.0
libtpu: 0.0.40
codegen_flags: <defaults>
</compile_context>

<pallas_src>
import functools
import math

import jax
import jax.numpy as jnp
from jax import lax
from jax.experimental import pallas as pl
from jax.experimental.pallas import tpu as pltpu


def lstm_kernel(x_ref, wih_ref, whh_ref, b_ref, w12_ref, b12_ref, out_ref,
                *, T, BB, H):
    """One batch block of BB independent sequences.

    x_ref   : (T, BB, I) bf16   time-major so each step's slab is contiguous
    wih_ref : (I, 4H)    bf16   i/f/o columns pre-scaled by 0.5
    whh_ref : (H, 4H)    bf16   i/f/o columns pre-scaled by 0.5
    b_ref   : (1, 4H)    f32    combined bias, i/f/o pre-scaled by 0.5
    w12_ref : (H, O)     f32    fused linear1@linear2 head
    b12_ref : (1, O)     f32
    out_ref : (BB, O)    f32
    """
    I = x_ref.shape[-1]

    # Hoisted input projection (+ bias) for ALL timesteps and sequences in one
    # bf16 MXU matmul with f32 accumulation.  Runs once, off the serial path.
    x2 = x_ref[...].reshape(T * BB, I)                              # bf16
    gates_x = (jnp.dot(x2, wih_ref[...],
                       preferred_element_type=jnp.float32)
               + b_ref[...])                                        # (T*BB, 4H) f32

    whh = whh_ref[...]                                              # (H, 4H) bf16

    h = jnp.zeros((BB, H), jnp.float32)
    c = jnp.zeros((BB, H), jnp.float32)

    # T is a static Python int -> fully unrolled at trace time; h/c in vregs.
    for t in range(T):
        pre = gates_x[t * BB:(t + 1) * BB, :] + jnp.dot(
            h.astype(jnp.bfloat16), whh,
            preferred_element_type=jnp.float32)                    # (BB, 4H)
        # Single tanh over the whole pre-activation.  Because the i/f/o gate
        # columns were pre-scaled by 0.5 offline, 0.5*(tanh(.)+1) == sigmoid of
        # the original pre-activation; the g gate (unscaled) is a plain tanh.
        tg = jnp.tanh(pre)
        i_g = 0.5 * (tg[:, 0 * H:1 * H] + 1.0)
        f_g = 0.5 * (tg[:, 1 * H:2 * H] + 1.0)
        g_g = tg[:, 2 * H:3 * H]
        o_g = 0.5 * (tg[:, 3 * H:4 * H] + 1.0)
        c = f_g * c + i_g * g_g
        h = o_g * jnp.tanh(c)

    # Dropout(p=0.2): identity in eval mode.  Fused head on h_T only.
    out = (jnp.dot(h, w12_ref[...], preferred_element_type=jnp.float32)
           + b12_ref[...])                                          # (BB, O)
    out_ref[...] = out.astype(out_ref.dtype)


def lstm_forward(x, kparams, *, block_b=None):
    """x: (B, T, I) float32, B independent sequences.

    Returns (B, O) float32: predictions[-1] for each sequence.
    """
    wih_t, whh_t, b, w12, b12 = kparams
    B, T, I = x.shape
    H = whh_t.shape[0]
    O = w12.shape[1]

    if block_b is None:
        block_b = B if B <= 128 else 128
    assert B % block_b == 0, "batch must be divisible by the batch block"
    assert block_b % 8 == 0 or block_b == B, "batch block should be sublane aligned"

    # Time-major, bf16 input so the hoisted projection is a single-pass bf16
    # MXU matmul and each step's (BB, 4H) slab is a contiguous row block.
    x_tb = jnp.transpose(x, (1, 0, 2)).astype(jnp.bfloat16)        # (T, B, I)

    kern = functools.partial(lstm_kernel, T=T, BB=block_b, H=H)

    out = pl.pallas_call(
        kern,
        out_shape=jax.ShapeDtypeStruct((B, O), jnp.float32),
        grid_spec=pltpu.PrefetchScalarGridSpec(
            num_scalar_prefetch=0,
            grid=(B // block_b,),
            in_specs=[
                pl.BlockSpec((T, block_b, I), lambda bi: (0, bi, 0)),
                # Weights: constant block index -> fetched once, stays resident.
                pl.BlockSpec((I, 4 * H), lambda bi: (0, 0)),
                pl.BlockSpec((H, 4 * H), lambda bi: (0, 0)),
                pl.BlockSpec((1, 4 * H), lambda bi: (0, 0)),
                pl.BlockSpec((H, O), lambda bi: (0, 0)),
                pl.BlockSpec((1, O), lambda bi: (0, 0)),
            ],
            out_specs=pl.BlockSpec((block_b, O), lambda bi: (bi, 0)),
        ),
        compiler_params=pltpu.CompilerParams(
            dimension_semantics=("parallel",)),
    )(x_tb, wih_t, whh_t, b, w12, b12)
    return out


def init_params(key, input_size, hidden_size, output_size):
    """Deterministic PyTorch-style uniform init, weights pre-transposed.

    Recurrence weights stored in bfloat16; biases and head weights float32.
    """
    h2 = math.ceil(5 / 4 * hidden_size)
    ks = jax.random.split(key, 8)
    s_lstm = 1.0 / math.sqrt(hidden_size)
    s_l1 = 1.0 / math.sqrt(hidden_size)
    s_l2 = 1.0 / math.sqrt(h2)

    def u(k, shape, s):
        return jax.random.uniform(k, shape, jnp.float32, -s, s)

    w_ih = u(ks[0], (4 * hidden_size, input_size), s_lstm)   # PyTorch layout
    w_hh = u(ks[1], (4 * hidden_size, hidden_size), s_lstm)
    b_ih = u(ks[2], (4 * hidden_size,), s_lstm)
    b_hh = u(ks[3], (4 * hidden_size,), s_lstm)
    w1 = u(ks[4], (h2, hidden_size), s_l1)
    b1 = u(ks[5], (h2,), s_l1)
    w2 = u(ks[6], (output_size, h2), s_l2)
    b2 = u(ks[7], (output_size,), s_l2)

    params = (w_ih.T.astype(jnp.bfloat16),          # (I, 4H)  bf16
              w_hh.T.astype(jnp.bfloat16),          # (H, 4H)  bf16
              (b_ih + b_hh)[None, :],               # (1, 4H)  f32
              w1.T,                                 # (H, H2)  f32
              b1[None, :],                          # (1, H2)  f32
              w2.T,                                 # (H2, O)  f32
              b2[None, :])                          # (1, O)   f32
    return params


def fuse_for_kernel(params):
    """Offline fusions:
      * linear1 @ linear2 (no nonlinearity between) -> single (H, O) head.
      * 0.5 pre-scale of the i/f/o gate columns of W_ih/W_hh/bias so sigmoid
        can be evaluated in-kernel as 0.5*(tanh(.)+1) (exact scale: power of 2).
    """
    wih_t, whh_t, b, w1_t, b1, w2_t, b2 = params
    H = whh_t.shape[0]
    # Gate order [i, f, g, o]: scale i/f/o by 0.5, leave g (tanh gate) at 1.
    scale = jnp.concatenate([jnp.full((2 * H,), 0.5, jnp.float32),
                             jnp.ones((H,), jnp.float32),
                             jnp.full((H,), 0.5, jnp.float32)])
    wih_s = (wih_t.astype(jnp.float32) * scale[None, :]).astype(jnp.bfloat16)
    whh_s = (whh_t.astype(jnp.float32) * scale[None, :]).astype(jnp.bfloat16)
    b_s = b * scale[None, :]
    w12 = w1_t @ w2_t            # (H, O)  f32
    b12 = b1 @ w2_t + b2         # (1, O)  f32
    return (wih_s, whh_s, b_s, w12, b12)


def reference_forward(x_seq, params):
    """Pure-JAX reference of the PyTorch forward (eval-mode dropout) for ONE
    sequence x_seq: (T, I).  Structurally faithful: per-step projections,
    jax.nn.sigmoid, unfused linear1/linear2."""
    wih_t, whh_t, b, w1_t, b1, w2_t, b2 = params
    wih = wih_t.astype(jnp.float32)
    whh = whh_t.astype(jnp.float32)
    H = whh_t.shape[0]
    h = jnp.zeros((1, H), jnp.float32)
    c = jnp.zeros((1, H), jnp.float32)

    def step(carry, x_t):
        h, c = carry
        gates = x_t[None, :] @ wih + h @ whh + b
        i = jax.nn.sigmoid(gates[:, 0 * H:1 * H])
        f = jax.nn.sigmoid(gates[:, 1 * H:2 * H])
        g = jnp.tanh(gates[:, 2 * H:3 * H])
        o = jax.nn.sigmoid(gates[:, 3 * H:4 * H])
        c = f * c + i * g
        h = o * jnp.tanh(c)
        return (h, c), h

    (h, _), _ = lax.scan(step, (h, c), x_seq)
    z1 = h @ w1_t + b1
    z2 = z1 @ w2_t + b2
    return z2[0]


if __name__ == "__main__":
    # Small shapes consistent with the module: seq=8, input=8, hidden=128,
    # intermediate=ceil(5/4*128)=160, output=8.  B=16 independent sequences,
    # batch block 8 -> grid of 2 (exercises the parallel batch grid).
    T, I, H, O = 8, 8, 128, 8
    B = 16

    key = jax.random.PRNGKey(0)
    k_x, k_p = jax.random.split(key)
    x = jax.random.normal(k_x, (B, T, I), jnp.float32)
    params = init_params(k_p, I, H, O)
    kparams = fuse_for_kernel(params)

    out = jax.block_until_ready(lstm_forward(x, kparams, block_b=8))
    ref = jax.vmap(lambda xs: reference_forward(xs, params))(x)

    assert out.shape == (B, O)
    # Kernel differs from the f32 reference only by bf16-casting x and the
    # per-step h at the MXU input, the tanh-identity sigmoid, and fp
    # reassociation from the fused head.
    assert jnp.allclose(out, ref, atol=2e-2, rtol=2e-2), (out, ref)
    print("KERNEL_OK")
</pallas_src>

<mosaic_0001>
module attributes {stable_mosaic.version = 11 : i64} {
  func.func @lstm_kernel(%arg0: i32, %arg1: memref<8x8x8xbf16, #tpu.memory_space<vmem>>, %arg2: memref<8x512xbf16, #tpu.memory_space<vmem>>, %arg3: memref<128x512xbf16, #tpu.memory_space<vmem>>, %arg4: memref<1x512xf32, #tpu.memory_space<vmem>>, %arg5: memref<128x8xf32, #tpu.memory_space<vmem>>, %arg6: memref<1x8xf32, #tpu.memory_space<vmem>>, %arg7: memref<8x8xf32, #tpu.memory_space<vmem>>) attributes {dimension_semantics = [#tpu.dimension_semantics<parallel>], iteration_bounds = array<i64: 2>, scalar_prefetch = 0 : i64, scratch_operands = 0 : i64, tpu.core_type = #tpu.core_type<tc>, window_params = [{transform_indices = @transform_0, window_bounds = array<i64: 8, 8, 8>}, {pipeline_mode = #tpu.pipeline_mode<synchronous>, transform_indices = @transform_1, window_bounds = array<i64: 8, 512>}, {pipeline_mode = #tpu.pipeline_mode<synchronous>, transform_indices = @transform_2, window_bounds = array<i64: 128, 512>}, {pipeline_mode = #tpu.pipeline_mode<synchronous>, transform_indices = @transform_3, window_bounds = array<i64: 1, 512>}, {pipeline_mode = #tpu.pipeline_mode<synchronous>, transform_indices = @transform_4, window_bounds = array<i64: 128, 8>}, {pipeline_mode = #tpu.pipeline_mode<synchronous>, transform_indices = @transform_5, window_bounds = array<i64: 1, 8>}, {transform_indices = @transform_6, window_bounds = array<i64: 8, 8>}]} {
    %c0 = arith.constant 0 : index
    %c0_0 = arith.constant 0 : index
    %c0_1 = arith.constant 0 : index
    %0 = vector.load %arg1[%c0, %c0_0, %c0_1] : memref<8x8x8xbf16, #tpu.memory_space<vmem>>, vector<8x8x8xbf16>
    %1 = vector.shape_cast %0 : vector<8x8x8xbf16> to vector<64x8xbf16>
    %c0_2 = arith.constant 0 : index
    %c0_3 = arith.constant 0 : index
    %2 = vector.load %arg2[%c0_2, %c0_3] : memref<8x512xbf16, #tpu.memory_space<vmem>>, vector<8x512xbf16>
    %cst = arith.constant dense<0.000000e+00> : vector<64x512xf32>
    %3 = tpu.matmul %1, %2, %cst {dimension_numbers = #tpu.dot_dimension_numbers<[1], [0], [0], [1], [0, 0, 1, 1], [], []>} : vector<64x8xbf16>, vector<8x512xbf16>, vector<64x512xf32> -> vector<64x512xf32>
    %c0_4 = arith.constant 0 : index
    %c0_5 = arith.constant 0 : index
    %4 = vector.load %arg4[%c0_4, %c0_5] : memref<1x512xf32, #tpu.memory_space<vmem>>, vector<1x512xf32>
    %5 = vector.broadcast %4 : vector<1x512xf32> to vector<64x512xf32>
    %6 = arith.addf %3, %5 : vector<64x512xf32>
    %c0_6 = arith.constant 0 : index
    %c0_7 = arith.constant 0 : index
    %7 = vector.load %arg3[%c0_6, %c0_7] : memref<128x512xbf16, #tpu.memory_space<vmem>>, vector<128x512xbf16>
    %cst_8 = arith.constant 0.000000e+00 : f32
    %8 = vector.broadcast %cst_8 : f32 to vector<8x128xf32>
    %cst_9 = arith.constant 0.000000e+00 : f32
    %9 = vector.broadcast %cst_9 : f32 to vector<8x128xf32>
    %10 = vector.extract_strided_slice %6 {offsets = [0, 0], sizes = [8, 512], strides = [1, 1]} : vector<64x512xf32> to vector<8x512xf32>
    %11 = arith.truncf %8 : vector<8x128xf32> to vector<8x128xbf16>
    %cst_10 = arith.constant dense<0.000000e+00> : vector<8x512xf32>
    %12 = tpu.matmul %11, %7, %cst_10 {dimension_numbers = #tpu.dot_dimension_numbers<[1], [0], [0], [1], [0, 0, 1, 1], [], []>} : vector<8x128xbf16>, vector<128x512xbf16>, vector<8x512xf32> -> vector<8x512xf32>
    %13 = arith.addf %10, %12 : vector<8x512xf32>
    %14 = math.tanh %13 : vector<8x512xf32>
    %15 = vector.extract_strided_slice %14 {offsets = [0, 0], sizes = [8, 128], strides = [1, 1]} : vector<8x512xf32> to vector<8x128xf32>
    %cst_11 = arith.constant 1.000000e+00 : f32
    %16 = vector.broadcast %cst_11 : f32 to vector<8x128xf32>
    %17 = arith.addf %15, %16 : vector<8x128xf32>
    %cst_12 = arith.constant 5.000000e-01 : f32
    %18 = vector.broadcast %cst_12 : f32 to vector<8x128xf32>
    %19 = arith.mulf %18, %17 : vector<8x128xf32>
    %20 = vector.extract_strided_slice %14 {offsets = [0, 128], sizes = [8, 128], strides = [1, 1]} : vector<8x512xf32> to vector<8x128xf32>
    %cst_13 = arith.constant 1.000000e+00 : f32
    %21 = vector.broadcast %cst_13 : f32 to vector<8x128xf32>
    %22 = arith.addf %20, %21 : vector<8x128xf32>
    %cst_14 = arith.constant 5.000000e-01 : f32
    %23 = vector.broadcast %cst_14 : f32 to vector<8x128xf32>
    %24 = arith.mulf %23, %22 : vector<8x128xf32>
    %25 = vector.extract_strided_slice %14 {offsets = [0, 256], sizes = [8, 128], strides = [1, 1]} : vector<8x512xf32> to vector<8x128xf32>
    %26 = vector.extract_strided_slice %14 {offsets = [0, 384], sizes = [8, 128], strides = [1, 1]} : vector<8x512xf32> to vector<8x128xf32>
    %cst_15 = arith.constant 1.000000e+00 : f32
    %27 = vector.broadcast %cst_15 : f32 to vector<8x128xf32>
    %28 = arith.addf %26, %27 : vector<8x128xf32>
    %cst_16 = arith.constant 5.000000e-01 : f32
    %29 = vector.broadcast %cst_16 : f32 to vector<8x128xf32>
    %30 = arith.mulf %29, %28 : vector<8x128xf32>
    %31 = arith.mulf %24, %9 : vector<8x128xf32>
    %32 = arith.mulf %19, %25 : vector<8x128xf32>
    %33 = arith.addf %31, %32 : vector<8x128xf32>
    %34 = math.tanh %33 : vector<8x128xf32>
    %35 = arith.mulf %30, %34 : vector<8x128xf32>
    %36 = vector.extract_strided_slice %6 {offsets = [8, 0], sizes = [8, 512], strides = [1, 1]} : vector<64x512xf32> to vector<8x512xf32>
    %37 = arith.truncf %35 : vector<8x128xf32> to vector<8x128xbf16>
    %cst_17 = arith.constant dense<0.000000e+00> : vector<8x512xf32>
    %38 = tpu.matmul %37, %7, %cst_17 {dimension_numbers = #tpu.dot_dimension_numbers<[1], [0], [0], [1], [0, 0, 1, 1], [], []>} : vector<8x128xbf16>, vector<128x512xbf16>, vector<8x512xf32> -> vector<8x512xf32>
    %39 = arith.addf %36, %38 : vector<8x512xf32>
    %40 = math.tanh %39 : vector<8x512xf32>
    %41 = vector.extract_strided_slice %40 {offsets = [0, 0], sizes = [8, 128], strides = [1, 1]} : vector<8x512xf32> to vector<8x128xf32>
    %cst_18 = arith.constant 1.000000e+00 : f32
    %42 = vector.broadcast %cst_18 : f32 to vector<8x128xf32>
    %43 = arith.addf %41, %42 : vector<8x128xf32>
    %cst_19 = arith.constant 5.000000e-01 : f32
    %44 = vector.broadcast %cst_19 : f32 to vector<8x128xf32>
    %45 = arith.mulf %44, %43 : vector<8x128xf32>
    %46 = vector.extract_strided_slice %40 {offsets = [0, 128], sizes = [8, 128], strides = [1, 1]} : vector<8x512xf32> to vector<8x128xf32>
    %cst_20 = arith.constant 1.000000e+00 : f32
    %47 = vector.broadcast %cst_20 : f32 to vector<8x128xf32>
    %48 = arith.addf %46, %47 : vector<8x128xf32>
    %cst_21 = arith.constant 5.000000e-01 : f32
    %49 = vector.broadcast %cst_21 : f32 to vector<8x128xf32>
    %50 = arith.mulf %49, %48 : vector<8x128xf32>
    %51 = vector.extract_strided_slice %40 {offsets = [0, 256], sizes = [8, 128], strides = [1, 1]} : vector<8x512xf32> to vector<8x128xf32>
    %52 = vector.extract_strided_slice %40 {offsets = [0, 384], sizes = [8, 128], strides = [1, 1]} : vector<8x512xf32> to vector<8x128xf32>
    %cst_22 = arith.constant 1.000000e+00 : f32
    %53 = vector.broadcast %cst_22 : f32 to vector<8x128xf32>
    %54 = arith.addf %52, %53 : vector<8x128xf32>
    %cst_23 = arith.constant 5.000000e-01 : f32
    %55 = vector.broadcast %cst_23 : f32 to vector<8x128xf32>
    %56 = arith.mulf %55, %54 : vector<8x128xf32>
    %57 = arith.mulf %50, %33 : vector<8x128xf32>
    %58 = arith.mulf %45, %51 : vector<8x128xf32>
    %59 = arith.addf %57, %58 : vector<8x128xf32>
    %60 = math.tanh %59 : vector<8x128xf32>
    %61 = arith.mulf %56, %60 : vector<8x128xf32>
    %62 = vector.extract_strided_slice %6 {offsets = [16, 0], sizes = [8, 512], strides = [1, 1]} : vector<64x512xf32> to vector<8x512xf32>
    %63 = arith.truncf %61 : vector<8x128xf32> to vector<8x128xbf16>
    %cst_24 = arith.constant dense<0.000000e+00> : vector<8x512xf32>
    %64 = tpu.matmul %63, %7, %cst_24 {dimension_numbers = #tpu.dot_dimension_numbers<[1], [0], [0], [1], [0, 0, 1, 1], [], []>} : vector<8x128xbf16>, vector<128x512xbf16>, vector<8x512xf32> -> vector<8x512xf32>
    %65 = arith.addf %62, %64 : vector<8x512xf32>
    %66 = math.tanh %65 : vector<8x512xf32>
    %67 = vector.extract_strided_slice %66 {offsets = [0, 0], sizes = [8, 128], strides = [1, 1]} : vector<8x512xf32> to vector<8x128xf32>
    %cst_25 = arith.constant 1.000000e+00 : f32
    %68 = vector.broadcast %cst_25 : f32 to vector<8x128xf32>
    %69 = arith.addf %67, %68 : vector<8x128xf32>
    %cst_26 = arith.constant 5.000000e-01 : f32
    %70 = vector.broadcast %cst_26 : f32 to vector<8x128xf32>
    %71 = arith.mulf %70, %69 : vector<8x128xf32>
    %72 = vector.extract_strided_slice %66 {offsets = [0, 128], sizes = [8, 128], strides = [1, 1]} : vector<8x512xf32> to vector<8x128xf32>
    %cst_27 = arith.constant 1.000000e+00 : f32
    %73 = vector.broadcast %cst_27 : f32 to vector<8x128xf32>
    %74 = arith.addf %72, %73 : vector<8x128xf32>
    %cst_28 = arith.constant 5.000000e-01 : f32
    %75 = vector.broadcast %cst_28 : f32 to vector<8x128xf32>
    %76 = arith.mulf %75, %74 : vector<8x128xf32>
    %77 = vector.extract_strided_slice %66 {offsets = [0, 256], sizes = [8, 128], strides = [1, 1]} : vector<8x512xf32> to vector<8x128xf32>
    %78 = vector.extract_strided_slice %66 {offsets = [0, 384], sizes = [8, 128], strides = [1, 1]} : vector<8x512xf32> to vector<8x128xf32>
    %cst_29 = arith.constant 1.000000e+00 : f32
    %79 = vector.broadcast %cst_29 : f32 to vector<8x128xf32>
    %80 = arith.addf %78, %79 : vector<8x128xf32>
    %cst_30 = arith.constant 5.000000e-01 : f32
    %81 = vector.broadcast %cst_30 : f32 to vector<8x128xf32>
    %82 = arith.mulf %81, %80 : vector<8x128xf32>
    %83 = arith.mulf %76, %59 : vector<8x128xf32>
    %84 = arith.mulf %71, %77 : vector<8x128xf32>
    %85 = arith.addf %83, %84 : vector<8x128xf32>
    %86 = math.tanh %85 : vector<8x128xf32>
    %87 = arith.mulf %82, %86 : vector<8x128xf32>
    %88 = vector.extract_strided_slice %6 {offsets = [24, 0], sizes = [8, 512], strides = [1, 1]} : vector<64x512xf32> to vector<8x512xf32>
    %89 = arith.truncf %87 : vector<8x128xf32> to vector<8x128xbf16>
    %cst_31 = arith.constant dense<0.000000e+00> : vector<8x512xf32>
    %90 = tpu.matmul %89, %7, %cst_31 {dimension_numbers = #tpu.dot_dimension_numbers<[1], [0], [0], [1], [0, 0, 1, 1], [], []>} : vector<8x128xbf16>, vector<128x512xbf16>, vector<8x512xf32> -> vector<8x512xf32>
    %91 = arith.addf %88, %90 : vector<8x512xf32>
    %92 = math.tanh %91 : vector<8x512xf32>
    %93 = vector.extract_strided_slice %92 {offsets = [0, 0], sizes = [8, 128], strides = [1, 1]} : vector<8x512xf32> to vector<8x128xf32>
    %cst_32 = arith.constant 1.000000e+00 : f32
    %94 = vector.broadcast %cst_32 : f32 to vector<8x128xf32>
    %95 = arith.addf %93, %94 : vector<8x128xf32>
    %cst_33 = arith.constant 5.000000e-01 : f32
    %96 = vector.broadcast %cst_33 : f32 to vector<8x128xf32>
    %97 = arith.mulf %96, %95 : vector<8x128xf32>
    %98 = vector.extract_strided_slice %92 {offsets = [0, 128], sizes = [8, 128], strides = [1, 1]} : vector<8x512xf32> to vector<8x128xf32>
    %cst_34 = arith.constant 1.000000e+00 : f32
    %99 = vector.broadcast %cst_34 : f32 to vector<8x128xf32>
    %100 = arith.addf %98, %99 : vector<8x128xf32>
    %cst_35 = arith.constant 5.000000e-01 : f32
    %101 = vector.broadcast %cst_35 : f32 to vector<8x128xf32>
    %102 = arith.mulf %101, %100 : vector<8x128xf32>
    %103 = vector.extract_strided_slice %92 {offsets = [0, 256], sizes = [8, 128], strides = [1, 1]} : vector<8x512xf32> to vector<8x128xf32>
    %104 = vector.extract_strided_slice %92 {offsets = [0, 384], sizes = [8, 128], strides = [1, 1]} : vector<8x512xf32> to vector<8x128xf32>
    %cst_36 = arith.constant 1.000000e+00 : f32
    %105 = vector.broadcast %cst_36 : f32 to vector<8x128xf32>
    %106 = arith.addf %104, %105 : vector<8x128xf32>
    %cst_37 = arith.constant 5.000000e-01 : f32
    %107 = vector.broadcast %cst_37 : f32 to vector<8x128xf32>
    %108 = arith.mulf %107, %106 : vector<8x128xf32>
    %109 = arith.mulf %102, %85 : vector<8x128xf32>
    %110 = arith.mulf %97, %103 : vector<8x128xf32>
    %111 = arith.addf %109, %110 : vector<8x128xf32>
    %112 = math.tanh %111 : vector<8x128xf32>
    %113 = arith.mulf %108, %112 : vector<8x128xf32>
    %114 = vector.extract_strided_slice %6 {offsets = [32, 0], sizes = [8, 512], strides = [1, 1]} : vector<64x512xf32> to vector<8x512xf32>
    %115 = arith.truncf %113 : vector<8x128xf32> to vector<8x128xbf16>
    %cst_38 = arith.constant dense<0.000000e+00> : vector<8x512xf32>
    %116 = tpu.matmul %115, %7, %cst_38 {dimension_numbers = #tpu.dot_dimension_numbers<[1], [0], [0], [1], [0, 0, 1, 1], [], []>} : vector<8x128xbf16>, vector<128x512xbf16>, vector<8x512xf32> -> vector<8x512xf32>
    %117 = arith.addf %114, %116 : vector<8x512xf32>
    %118 = math.tanh %117 : vector<8x512xf32>
    %119 = vector.extract_strided_slice %118 {offsets = [0, 0], sizes = [8, 128], strides = [1, 1]} : vector<8x512xf32> to vector<8x128xf32>
    %cst_39 = arith.constant 1.000000e+00 : f32
    %120 = vector.broadcast %cst_39 : f32 to vector<8x128xf32>
    %121 = arith.addf %119, %120 : vector<8x128xf32>
    %cst_40 = arith.constant 5.000000e-01 : f32
    %122 = vector.broadcast %cst_40 : f32 to vector<8x128xf32>
    %123 = arith.mulf %122, %121 : vector<8x128xf32>
    %124 = vector.extract_strided_slice %118 {offsets = [0, 128], sizes = [8, 128], strides = [1, 1]} : vector<8x512xf32> to vector<8x128xf32>
    %cst_41 = arith.constant 1.000000e+00 : f32
    %125 = vector.broadcast %cst_41 : f32 to vector<8x128xf32>
    %126 = arith.addf %124, %125 : vector<8x128xf32>
    %cst_42 = arith.constant 5.000000e-01 : f32
    %127 = vector.broadcast %cst_42 : f32 to vector<8x128xf32>
    %128 = arith.mulf %127, %126 : vector<8x128xf32>
    %129 = vector.extract_strided_slice %118 {offsets = [0, 256], sizes = [8, 128], strides = [1, 1]} : vector<8x512xf32> to vector<8x128xf32>
    %130 = vector.extract_strided_slice %118 {offsets = [0, 384], sizes = [8, 128], strides = [1, 1]} : vector<8x512xf32> to vector<8x128xf32>
    %cst_43 = arith.constant 1.000000e+00 : f32
    %131 = vector.broadcast %cst_43 : f32 to vector<8x128xf32>
    %132 = arith.addf %130, %131 : vector<8x128xf32>
    %cst_44 = arith.constant 5.000000e-01 : f32
    %133 = vector.broadcast %cst_44 : f32 to vector<8x128xf32>
    %134 = arith.mulf %133, %132 : vector<8x128xf32>
    %135 = arith.mulf %128, %111 : vector<8x128xf32>
    %136 = arith.mulf %123, %129 : vector<8x128xf32>
    %137 = arith.addf %135, %136 : vector<8x128xf32>
    %138 = math.tanh %137 : vector<8x128xf32>
    %139 = arith.mulf %134, %138 : vector<8x128xf32>
    %140 = vector.extract_strided_slice %6 {offsets = [40, 0], sizes = [8, 512], strides = [1, 1]} : vector<64x512xf32> to vector<8x512xf32>
    %141 = arith.truncf %139 : vector<8x128xf32> to vector<8x128xbf16>
    %cst_45 = arith.constant dense<0.000000e+00> : vector<8x512xf32>
    %142 = tpu.matmul %141, %7, %cst_45 {dimension_numbers = #tpu.dot_dimension_numbers<[1], [0], [0], [1], [0, 0, 1, 1], [], []>} : vector<8x128xbf16>, vector<128x512xbf16>, vector<8x512xf32> -> vector<8x512xf32>
    %143 = arith.addf %140, %142 : vector<8x512xf32>
    %144 = math.tanh %143 : vector<8x512xf32>
    %145 = vector.extract_strided_slice %144 {offsets = [0, 0], sizes = [8, 128], strides = [1, 1]} : vector<8x512xf32> to vector<8x128xf32>
    %cst_46 = arith.constant 1.000000e+00 : f32
    %146 = vector.broadcast %cst_46 : f32 to vector<8x128xf32>
    %147 = arith.addf %145, %146 : vector<8x128xf32>
    %cst_47 = arith.constant 5.000000e-01 : f32
    %148 = vector.broadcast %cst_47 : f32 to vector<8x128xf32>
    %149 = arith.mulf %148, %147 : vector<8x128xf32>
    %150 = vector.extract_strided_slice %144 {offsets = [0, 128], sizes = [8, 128], strides = [1, 1]} : vector<8x512xf32> to vector<8x128xf32>
    %cst_48 = arith.constant 1.000000e+00 : f32
    %151 = vector.broadcast %cst_48 : f32 to vector<8x128xf32>
    %152 = arith.addf %150, %151 : vector<8x128xf32>
    %cst_49 = arith.constant 5.000000e-01 : f32
    %153 = vector.broadcast %cst_49 : f32 to vector<8x128xf32>
    %154 = arith.mulf %153, %152 : vector<8x128xf32>
    %155 = vector.extract_strided_slice %144 {offsets = [0, 256], sizes = [8, 128], strides = [1, 1]} : vector<8x512xf32> to vector<8x128xf32>
    %156 = vector.extract_strided_slice %144 {offsets = [0, 384], sizes = [8, 128], strides = [1, 1]} : vector<8x512xf32> to vector<8x128xf32>
    %cst_50 = arith.constant 1.000000e+00 : f32
    %157 = vector.broadcast %cst_50 : f32 to vector<8x128xf32>
    %158 = arith.addf %156, %157 : vector<8x128xf32>
    %cst_51 = arith.constant 5.000000e-01 : f32
    %159 = vector.broadcast %cst_51 : f32 to vector<8x128xf32>
    %160 = arith.mulf %159, %158 : vector<8x128xf32>
    %161 = arith.mulf %154, %137 : vector<8x128xf32>
    %162 = arith.mulf %149, %155 : vector<8x128xf32>
    %163 = arith.addf %161, %162 : vector<8x128xf32>
    %164 = math.tanh %163 : vector<8x128xf32>
    %165 = arith.mulf %160, %164 : vector<8x128xf32>
    %166 = vector.extract_strided_slice %6 {offsets = [48, 0], sizes = [8, 512], strides = [1, 1]} : vector<64x512xf32> to vector<8x512xf32>
    %167 = arith.truncf %165 : vector<8x128xf32> to vector<8x128xbf16>
    %cst_52 = arith.constant dense<0.000000e+00> : vector<8x512xf32>
    %168 = tpu.matmul %167, %7, %cst_52 {dimension_numbers = #tpu.dot_dimension_numbers<[1], [0], [0], [1], [0, 0, 1, 1], [], []>} : vector<8x128xbf16>, vector<128x512xbf16>, vector<8x512xf32> -> vector<8x512xf32>
    %169 = arith.addf %166, %168 : vector<8x512xf32>
    %170 = math.tanh %169 : vector<8x512xf32>
    %171 = vector.extract_strided_slice %170 {offsets = [0, 0], sizes = [8, 128], strides = [1, 1]} : vector<8x512xf32> to vector<8x128xf32>
    %cst_53 = arith.constant 1.000000e+00 : f32
    %172 = vector.broadcast %cst_53 : f32 to vector<8x128xf32>
    %173 = arith.addf %171, %172 : vector<8x128xf32>
    %cst_54 = arith.constant 5.000000e-01 : f32
    %174 = vector.broadcast %cst_54 : f32 to vector<8x128xf32>
    %175 = arith.mulf %174, %173 : vector<8x128xf32>
    %176 = vector.extract_strided_slice %170 {offsets = [0, 128], sizes = [8, 128], strides = [1, 1]} : vector<8x512xf32> to vector<8x128xf32>
    %cst_55 = arith.constant 1.000000e+00 : f32
    %177 = vector.broadcast %cst_55 : f32 to vector<8x128xf32>
    %178 = arith.addf %176, %177 : vector<8x128xf32>
    %cst_56 = arith.constant 5.000000e-01 : f32
    %179 = vector.broadcast %cst_56 : f32 to vector<8x128xf32>
    %180 = arith.mulf %179, %178 : vector<8x128xf32>
    %181 = vector.extract_strided_slice %170 {offsets = [0, 256], sizes = [8, 128], strides = [1, 1]} : vector<8x512xf32> to vector<8x128xf32>
    %182 = vector.extract_strided_slice %170 {offsets = [0, 384], sizes = [8, 128], strides = [1, 1]} : vector<8x512xf32> to vector<8x128xf32>
    %cst_57 = arith.constant 1.000000e+00 : f32
    %183 = vector.broadcast %cst_57 : f32 to vector<8x128xf32>
    %184 = arith.addf %182, %183 : vector<8x128xf32>
    %cst_58 = arith.constant 5.000000e-01 : f32
    %185 = vector.broadcast %cst_58 : f32 to vector<8x128xf32>
    %186 = arith.mulf %185, %184 : vector<8x128xf32>
    %187 = arith.mulf %180, %163 : vector<8x128xf32>
    %188 = arith.mulf %175, %181 : vector<8x128xf32>
    %189 = arith.addf %187, %188 : vector<8x128xf32>
    %190 = math.tanh %189 : vector<8x128xf32>
    %191 = arith.mulf %186, %190 : vector<8x128xf32>
    %192 = vector.extract_strided_slice %6 {offsets = [56, 0], sizes = [8, 512], strides = [1, 1]} : vector<64x512xf32> to vector<8x512xf32>
    %193 = arith.truncf %191 : vector<8x128xf32> to vector<8x128xbf16>
    %cst_59 = arith.constant dense<0.000000e+00> : vector<8x512xf32>
    %194 = tpu.matmul %193, %7, %cst_59 {dimension_numbers = #tpu.dot_dimension_numbers<[1], [0], [0], [1], [0, 0, 1, 1], [], []>} : vector<8x128xbf16>, vector<128x512xbf16>, vector<8x512xf32> -> vector<8x512xf32>
    %195 = arith.addf %192, %194 : vector<8x512xf32>
    %196 = math.tanh %195 : vector<8x512xf32>
    %197 = vector.extract_strided_slice %196 {offsets = [0, 0], sizes = [8, 128], strides = [1, 1]} : vector<8x512xf32> to vector<8x128xf32>
    %cst_60 = arith.constant 1.000000e+00 : f32
    %198 = vector.broadcast %cst_60 : f32 to vector<8x128xf32>
    %199 = arith.addf %197, %198 : vector<8x128xf32>
    %cst_61 = arith.constant 5.000000e-01 : f32
    %200 = vector.broadcast %cst_61 : f32 to vector<8x128xf32>
    %201 = arith.mulf %200, %199 : vector<8x128xf32>
    %202 = vector.extract_strided_slice %196 {offsets = [0, 128], sizes = [8, 128], strides = [1, 1]} : vector<8x512xf32> to vector<8x128xf32>
    %cst_62 = arith.constant 1.000000e+00 : f32
    %203 = vector.broadcast %cst_62 : f32 to vector<8x128xf32>
    %204 = arith.addf %202, %203 : vector<8x128xf32>
    %cst_63 = arith.constant 5.000000e-01 : f32
    %205 = vector.broadcast %cst_63 : f32 to vector<8x128xf32>
    %206 = arith.mulf %205, %204 : vector<8x128xf32>
    %207 = vector.extract_strided_slice %196 {offsets = [0, 256], sizes = [8, 128], strides = [1, 1]} : vector<8x512xf32> to vector<8x128xf32>
    %208 = vector.extract_strided_slice %196 {offsets = [0, 384], sizes = [8, 128], strides = [1, 1]} : vector<8x512xf32> to vector<8x128xf32>
    %cst_64 = arith.constant 1.000000e+00 : f32
    %209 = vector.broadcast %cst_64 : f32 to vector<8x128xf32>
    %210 = arith.addf %208, %209 : vector<8x128xf32>
    %cst_65 = arith.constant 5.000000e-01 : f32
    %211 = vector.broadcast %cst_65 : f32 to vector<8x128xf32>
    %212 = arith.mulf %211, %210 : vector<8x128xf32>
    %213 = arith.mulf %206, %189 : vector<8x128xf32>
    %214 = arith.mulf %201, %207 : vector<8x128xf32>
    %215 = arith.addf %213, %214 : vector<8x128xf32>
    %216 = math.tanh %215 : vector<8x128xf32>
    %217 = arith.mulf %212, %216 : vector<8x128xf32>
    %c0_66 = arith.constant 0 : index
    %c0_67 = arith.constant 0 : index
    %218 = vector.load %arg5[%c0_66, %c0_67] : memref<128x8xf32, #tpu.memory_space<vmem>>, vector<128x8xf32>
    %cst_68 = arith.constant dense<0.000000e+00> : vector<8x8xf32>
    %219 = tpu.matmul %217, %218, %cst_68 {dimension_numbers = #tpu.dot_dimension_numbers<[1], [0], [0], [1], [0, 0, 1, 1], [], []>} : vector<8x128xf32>, vector<128x8xf32>, vector<8x8xf32> -> vector<8x8xf32>
    %c0_69 = arith.constant 0 : index
    %c0_70 = arith.constant 0 : index
    %220 = vector.load %arg6[%c0_69, %c0_70] : memref<1x8xf32, #tpu.memory_space<vmem>>, vector<1x8xf32>
    %221 = vector.broadcast %220 : vector<1x8xf32> to vector<8x8xf32>
    %222 = arith.addf %219, %221 : vector<8x8xf32>
    %c0_71 = arith.constant 0 : index
    %c0_72 = arith.constant 0 : index
    %223 = vector.load %arg7[%c0_71, %c0_72] : memref<8x8xf32, #tpu.memory_space<vmem>>, vector<8x8xf32>
    tpu.vector_store %arg7[%c0_71, %c0_72], %222 {strides = array<i32>} : memref<8x8xf32, #tpu.memory_space<vmem>>, vector<8x8xf32>,
    return
  }
  func.func @transform_0(%arg0: i32) -> (i32, i32, i32) {
    %c0_i32 = arith.constant 0 : i32
    %c0_i32_0 = arith.constant 0 : i32
    %c0_i32_1 = arith.constant 0 : i32
    return %c0_i32, %arg0, %c0_i32_0 : i32, i32, i32
  }
  func.func @transform_1(%arg0: i32) -> (i32, i32) {
    %c0_i32 = arith.constant 0 : i32
    %c0_i32_0 = arith.constant 0 : i32
    %c0_i32_1 = arith.constant 0 : i32
    return %c0_i32, %c0_i32_0 : i32, i32
  }
  func.func @transform_2(%arg0: i32) -> (i32, i32) {
    %c0_i32 = arith.constant 0 : i32
    %c0_i32_0 = arith.constant 0 : i32
    %c0_i32_1 = arith.constant 0 : i32
    return %c0_i32, %c0_i32_0 : i32, i32
  }
  func.func @transform_3(%arg0: i32) -> (i32, i32) {
    %c0_i32 = arith.constant 0 : i32
    %c0_i32_0 = arith.constant 0 : i32
    %c0_i32_1 = arith.constant 0 : i32
    return %c0_i32, %c0_i32_0 : i32, i32
  }
  func.func @transform_4(%arg0: i32) -> (i32, i32) {
    %c0_i32 = arith.constant 0 : i32
    %c0_i32_0 = arith.constant 0 : i32
    %c0_i32_1 = arith.constant 0 : i32
    return %c0_i32, %c0_i32_0 : i32, i32
  }
  func.func @transform_5(%arg0: i32) -> (i32, i32) {
    %c0_i32 = arith.constant 0 : i32
    %c0_i32_0 = arith.constant 0 : i32
    %c0_i32_1 = arith.constant 0 : i32
    return %c0_i32, %c0_i32_0 : i32, i32
  }
  func.func @transform_6(%arg0: i32) -> (i32, i32) {
    %c0_i32 = arith.constant 0 : i32
    %c0_i32_0 = arith.constant 0 : i32
    return %arg0, %c0_i32 : i32, i32
  }
}

</mosaic_0001>

<llo_original>
// kernel: tpu_custom_call.1
$region0: #{tpu_custom_call.1}
  #allocation0 [shape = 'u32[]', space=smem, size = 0x4, offset = 0x4, fixed_abs, tag = 'smem constant byte address 0x4 - core index']
  #allocation1 [shape = 'u32[72,128]{1,0:T(1,128)}', space=vmem, size = 0x9000, scoped, tag = 'internal scratch']
  %s0 = inlined_call_operand.vmem [shape: bf16[8,16,8], index: 0, kind: input, shape index: {}]
  %s1 = inlined_call_operand.vmem [shape: bf16[8,512], index: 1, kind: input, shape index: {}]
  %s2 = inlined_call_operand.hbm [shape: bf16[128,512], index: 2, kind: input, shape index: {}]
  %s3 = inlined_call_operand.vmem [shape: f32[1,512], index: 3, kind: input, shape index: {}]
  %s4 = inlined_call_operand.vmem [shape: f32[128,8], index: 4, kind: input, shape index: {}]
  %s5 = inlined_call_operand.vmem [shape: f32[1,8], index: 5, kind: input, shape index: {}]
  %s6 = inlined_call_operand.vmem [shape: f32[16,8], index: 6, kind: output, shape index: {}]
  %s7 = sld [smem:[#allocation0]]
  $region102: #{tpu_custom_call.1} parent=0
    _
  %s9 = ssub.s32 1, %s7
  %s10 = scalar_select 0, %s9, %s7
  $region1: #{tpu_custom_call.1} parent=0
    #allocation2 [shape = 'u8[32768]{0}', space=vmem, size = 0x8000, scoped, tag = 'input window, operand 0']
    #allocation3 [shape = 'u8[131072]{0}', space=vmem, size = 0x20000, scoped, tag = 'input window, operand 2, single buffered']
    #allocation4 [shape = 's32[2]{0}', space=sflag, size = 0x8, scoped, tag = 'scoped memory for tpu_custom_call.1']
    %11 = vsyncpa [#allocation4], 0
    loop: start=0, step=1, limit=4
    $region2: #{tpu_custom_call.1} parent=1 // loop_pre_header
      _
    $region3: #{tpu_custom_call.1} parent=1 // loop_header
      %s13 = sphi 0, %s17
      %p14 = scmp.ge.s32.totalorder %s13, 4
      %s23 = sphi 0, %s25
      %s26 = sphi 0, %s23
      %s27 = sphi 0, %s26
      %s43 = sphi 0, %s27
      %s47 = sphi 0, %s47
      %s49 = sphi 0, %s47
      %s50 = sphi 0, %s49
      %s64 = sphi 0, %s50
      %s68 = sphi 0, %s68
      %s70 = sphi 0, %s68
      %s71 = sphi 0, %s70
      %s85 = sphi 0, %s71
      %s89 = sphi 0, %s89
      %s91 = sphi 0, %s89
      %s92 = sphi 0, %s91
      %s106 = sphi 0, %s92
      %s110 = sphi 0, %s110
      %s112 = sphi 0, %s110
      %s113 = sphi 0, %s112
      %s127 = sphi 0, %s113
      %s131 = sphi 0, %s131
      %s133 = sphi 0, %s131
      %s134 = sphi 0, %s133
      %s148 = sphi 0, %s134
      %s154 = sphi 0, %s156
      %s157 = sphi 0, %s154
      %s158 = sphi 0, %s157
      %s174 = sphi 0, %s158
    $region4: #{tpu_custom_call.1} parent=1 // loop_header_branch
      %16 = sbr.rel (%p14) target = $region8
    $region5: #{tpu_custom_call.1} parent=1 // loop_body
      %s18 = ssub.s32 %s13, 1
      %s19 = ssub.s32 %s13, 2
      %s20 = sadd.s32 %s13, 1
      %s21 = ssub.s32 %s13, %s20
      %p22 = scmp.eq.s32.totalorder %s21, 0
      %s24 = sadd.s32 %s23, 1
      %s25 = scalar_select %p22, %s23, %s24
      %p28 = pneg %p22
      %p29 = scmp.eq.s32.totalorder %s13, 1
      %p30 = por %p28, %p29
      %p31 = scmp.ne.s32.totalorder %s23, %s26
      %p32 = scmp.eq.s32.totalorder %s13, 0
      %p33 = por %p31, %p32
      %p34 = scmp.ne.s32.totalorder %s23, %s26
      %p35 = scmp.eq.s32.totalorder %s18, 1
      %p36 = por %p34, %p35
      %p37 = scmp.ne.s32.totalorder %s26, %s27
      %p38 = scmp.eq.s32.totalorder %s18, 0
      %p39 = por %p37, %p38
      %p40 = scmp.ne.s32.totalorder %s26, %s27
      %p41 = scmp.eq.s32.totalorder %s19, 1
      %p42 = por %p40, %p41
      %p44 = scmp.ne.s32.totalorder %s27, %s43
      %p45 = scmp.eq.s32.totalorder %s19, 0
      %p46 = por %p44, %p45
      %s48 = sadd.s32 %s47, 1
      %p51 = scmp.eq.s32.totalorder %s13, 1
      %p52 = scmp.ne.s32.totalorder %s47, %s49
      %p53 = scmp.eq.s32.totalorder %s13, 0
      %p54 = por %p52, %p53
      %p55 = scmp.ne.s32.totalorder %s47, %s49
      %p56 = scmp.eq.s32.totalorder %s18, 1
      %p57 = por %p55, %p56
      %p58 = scmp.ne.s32.totalorder %s49, %s50
      %p59 = scmp.eq.s32.totalorder %s18, 0
      %p60 = por %p58, %p59
      %p61 = scmp.ne.s32.totalorder %s49, %s50
      %p62 = scmp.eq.s32.totalorder %s19, 1
      %p63 = por %p61, %p62
      %p65 = scmp.ne.s32.totalorder %s50, %s64
      %p66 = scmp.eq.s32.totalorder %s19, 0
      %p67 = por %p65, %p66
      %s69 = sadd.s32 %s68, 1
      %p72 = scmp.eq.s32.totalorder %s13, 1
      %p73 = scmp.ne.s32.totalorder %s68, %s70
      %p74 = scmp.eq.s32.totalorder %s13, 0
      %p75 = por %p73, %p74
      %p76 = scmp.ne.s32.totalorder %s68, %s70
      %p77 = scmp.eq.s32.totalorder %s18, 1
      %p78 = por %p76, %p77
      %p79 = scmp.ne.s32.totalorder %s70, %s71
      %p80 = scmp.eq.s32.totalorder %s18, 0
      %p81 = por %p79, %p80
      %p82 = scmp.ne.s32.totalorder %s70, %s71
      %p83 = scmp.eq.s32.totalorder %s19, 1
      %p84 = por %p82, %p83
      %p86 = scmp.ne.s32.totalorder %s71, %s85
      %p87 = scmp.eq.s32.totalorder %s19, 0
      %p88 = por %p86, %p87
      %s90 = sadd.s32 %s89, 1
      %p93 = scmp.eq.s32.totalorder %s13, 1
      %p94 = scmp.ne.s32.totalorder %s89, %s91
      %p95 = scmp.eq.s32.totalorder %s13, 0
      %p96 = por %p94, %p95
      %p97 = scmp.ne.s32.totalorder %s89, %s91
      %p98 = scmp.eq.s32.totalorder %s18, 1
      %p99 = por %p97, %p98
      %p100 = scmp.ne.s32.totalorder %s91, %s92
      %p101 = scmp.eq.s32.totalorder %s18, 0
      %p102 = por %p100, %p101
      %p103 = scmp.ne.s32.totalorder %s91, %s92
      %p104 = scmp.eq.s32.totalorder %s19, 1
      %p105 = por %p103, %p104
      %p107 = scmp.ne.s32.totalorder %s92, %s106
      %p108 = scmp.eq.s32.totalorder %s19, 0
      %p109 = por %p107, %p108
      %s111 = sadd.s32 %s110, 1
      %p114 = scmp.eq.s32.totalorder %s13, 1
      %p115 = scmp.ne.s32.totalorder %s110, %s112
      %p116 = scmp.eq.s32.totalorder %s13, 0
      %p117 = por %p115, %p116
      %p118 = scmp.ne.s32.totalorder %s110, %s112
      %p119 = scmp.eq.s32.totalorder %s18, 1
      %p120 = por %p118, %p119
      %p121 = scmp.ne.s32.totalorder %s112, %s113
      %p122 = scmp.eq.s32.totalorder %s18, 0
      %p123 = por %p121, %p122
      %p124 = scmp.ne.s32.totalorder %s112, %s113
      %p125 = scmp.eq.s32.totalorder %s19, 1
      %p126 = por %p124, %p125
      %p128 = scmp.ne.s32.totalorder %s113, %s127
      %p129 = scmp.eq.s32.totalorder %s19, 0
      %p130 = por %p128, %p129
      %s132 = sadd.s32 %s131, 1
      %p135 = scmp.eq.s32.totalorder %s13, 1
      %p136 = scmp.ne.s32.totalorder %s131, %s133
      %p137 = scmp.eq.s32.totalorder %s13, 0
      %p138 = por %p136, %p137
      %p139 = scmp.ne.s32.totalorder %s131, %s133
      %p140 = scmp.eq.s32.totalorder %s18, 1
      %p141 = por %p139, %p140
      %p142 = scmp.ne.s32.totalorder %s133, %s134
      %p143 = scmp.eq.s32.totalorder %s18, 0
      %p144 = por %p142, %p143
      %p145 = scmp.ne.s32.totalorder %s133, %s134
      %p146 = scmp.eq.s32.totalorder %s19, 1
      %p147 = por %p145, %p146
      %p149 = scmp.ne.s32.totalorder %s134, %s148
      %p150 = scmp.eq.s32.totalorder %s19, 0
      %p151 = por %p149, %p150
      %s152 = ssub.s32 %s13, %s20
      %p153 = scmp.eq.s32.totalorder %s152, 0
      %s155 = sadd.s32 %s154, 1
      %s156 = scalar_select %p153, %s154, %s155
      %p159 = pneg %p153
      %p160 = scmp.eq.s32.totalorder %s13, 1
      %p161 = por %p159, %p160
      %p162 = scmp.ne.s32.totalorder %s154, %s157
      %p163 = scmp.eq.s32.totalorder %s13, 0
      %p164 = por %p162, %p163
      %p165 = scmp.ne.s32.totalorder %s154, %s157
      %p166 = scmp.eq.s32.totalorder %s18, 1
      %p167 = por %p165, %p166
      %p168 = scmp.ne.s32.totalorder %s157, %s158
      %p169 = scmp.eq.s32.totalorder %s18, 0
      %p170 = por %p168, %p169
      %p171 = scmp.ne.s32.totalorder %s157, %s158
      %p172 = scmp.eq.s32.totalorder %s19, 1
      %p173 = por %p171, %p172
      %p175 = scmp.ne.s32.totalorder %s158, %s174
      %p176 = scmp.eq.s32.totalorder %s19, 0
      %p177 = por %p175, %p176
      %p178 = scmp.le.s32.totalorder 1, %s13
      %p179 = scmp.lt.s32.totalorder %s13, 3
      %p180 = pnand %p178, %p179
      %p181 = pneg %p180
      // Predicated region
      $region9: #{tpu_custom_call.1} parent=5 // pred_check
        _
      $region10: #{tpu_custom_call.1} parent=5 // pred_check_branch
        %183 = sbr.rel (%p180) target = $region12
      $region11: #{tpu_custom_call.1} parent=5 // pred_region
        %s184 = ssub.s32 %s13, 1
        // Predicated region
        $region13: #{tpu_custom_call.1} parent=11 // pred_check
          %p185 = pneg %p60
        $region14: #{tpu_custom_call.1} parent=11 // pred_check_branch
          %187 = sbr.rel (%p185) target = $region16
        $region15: #{tpu_custom_call.1} parent=11 // pred_region
          _
        $region16: #{tpu_custom_call.1} parent=11 // pred_fallthru
          _
        // Predicated region
        $region17: #{tpu_custom_call.1} parent=11 // pred_check
          %p188 = pneg %p81
        $region18: #{tpu_custom_call.1} parent=11 // pred_check_branch
          %190 = sbr.rel (%p188) target = $region20
        $region19: #{tpu_custom_call.1} parent=11 // pred_region
          %192 = vsyncadd [#allocation4], 0
          %s193 = sshll.u32 %s2, 4
          %s194 = int_to_ptr.hbm [resolvable:$true] %s193
          %s195 = sshll.u32 [#allocation3], 4
          %s196 = int_to_ptr.vmem [resolvable:$true] %s195
          %201 = dma.hbm_to_vmem [thread:$0]  %s194, 4096, %s196, [#allocation4], 256, 256, 16
        $region20: #{tpu_custom_call.1} parent=11 // pred_fallthru
          _
        // Predicated region
        $region21: #{tpu_custom_call.1} parent=11 // pred_check
          %p202 = pneg %p102
        $region22: #{tpu_custom_call.1} parent=11 // pred_check_branch
          %204 = sbr.rel (%p202) target = $region24
        $region23: #{tpu_custom_call.1} parent=11 // pred_region
          _
        $region24: #{tpu_custom_call.1} parent=11 // pred_fallthru
          _
        // Predicated region
        $region25: #{tpu_custom_call.1} parent=11 // pred_check
          %p205 = pneg %p123
        $region26: #{tpu_custom_call.1} parent=11 // pred_check_branch
          %207 = sbr.rel (%p205) target = $region28
        $region27: #{tpu_custom_call.1} parent=11 // pred_region
          _
        $region28: #{tpu_custom_call.1} parent=11 // pred_fallthru
          _
        // Predicated region
        $region29: #{tpu_custom_call.1} parent=11 // pred_check
          %p208 = pneg %p144
        $region30: #{tpu_custom_call.1} parent=11 // pred_check_branch
          %210 = sbr.rel (%p208) target = $region32
        $region31: #{tpu_custom_call.1} parent=11 // pred_region
          _
        $region32: #{tpu_custom_call.1} parent=11 // pred_fallthru
          _
      $region12: #{tpu_custom_call.1} parent=5 // pred_fallthru
        _
      %p211 = scmp.lt.s32.totalorder %s13, 2
      // Predicated region
      $region33: #{tpu_custom_call.1} parent=5 // pred_check
        %p212 = pneg %p211
      $region34: #{tpu_custom_call.1} parent=5 // pred_check_branch
        %214 = sbr.rel (%p212) target = $region36
      $region35: #{tpu_custom_call.1} parent=5 // pred_region
        // Predicated region
        $region37: #{tpu_custom_call.1} parent=35 // pred_check
          %p215 = pneg %p33
        $region38: #{tpu_custom_call.1} parent=35 // pred_check_branch
          %217 = sbr.rel (%p215) target = $region40
        $region39: #{tpu_custom_call.1} parent=35 // pred_region
          %s218 = sand.u32 %s23, 1
          %s219 = sand.u32 %s23, 1
          %s220 = smul.addr %s219, 32
          %s221 = scalar_lea.vmem [#allocation2], %s220
          %s222 = smul.addr %s13, 4
          %s223 = scalar_lea.vmem %s0, %s222
          // Predicated region
          $region41: #{tpu_custom_call.1} parent=39 // pred_check
            _
          $region42: #{tpu_custom_call.1} parent=39 // pred_check_branch
            %225 = sbr.rel (0) target = $region44
          $region43: #{tpu_custom_call.1} parent=39 // pred_region
            // Predicated region
            $region45: #{tpu_custom_call.1} parent=43 // pred_check
              _
            $region46: #{tpu_custom_call.1} parent=43 // pred_check_branch
              %227 = sbr.rel target = $region48
            $region47: #{tpu_custom_call.1} parent=43 // pred_region
              // Predicated region
              $region60: #{tpu_custom_call.1} parent=47 // pred_check
                _
              $region61: #{tpu_custom_call.1} parent=47 // pred_check_branch
                %257 = sbr.rel (0) target = $region63
              $region62: #{tpu_custom_call.1} parent=47 // pred_region
                loop: start=0, step=1, limit=1
                $region64: #{tpu_custom_call.1} parent=62 // loop_pre_header
                  _
                $region65: #{tpu_custom_call.1} parent=62 // loop_header
                  %s259 = sphi 0, %s263
                  %p260 = scmp.ge.s32.totalorder %s259, 1
                  %s264 = sphi %s223, %s223
                  %s265 = sphi %s221, %s221
                $region66: #{tpu_custom_call.1} parent=62 // loop_header_branch
                  %262 = sbr.rel (%p260) target = $region70
                $region67: #{tpu_custom_call.1} parent=62 // loop_body
                  _
                $region68: #{tpu_custom_call.1} parent=62 // loop_footer
                  %s263 = sadd.s32 1, %s259
                $region69: #{tpu_custom_call.1} parent=62 // loop_footer_branch
                  %258 = sbr.rel target = $region65
                $region70: #{tpu_custom_call.1} parent=62 // loop_exit
                  _
                %s267 = ssub.s32 16, 1
                loop: start=0, step=1, limit=1
                $region71: #{tpu_custom_call.1} parent=62 // loop_pre_header
                  _
                $region72: #{tpu_custom_call.1} parent=62 // loop_header
                  %s269 = sphi 0, %s273
                  %p270 = scmp.ge.s32.totalorder %s269, 1
                  %s274 = sphi %s223, %s223
                  %s275 = sphi %s221, %s221
                $region73: #{tpu_custom_call.1} parent=62 // loop_header_branch
                  %272 = sbr.rel (%p270) target = $region77
                $region74: #{tpu_custom_call.1} parent=62 // loop_body
                  %v276 = vld [vmem:[%s274] sm:%s267]
                  %277 = vst [vmem:[%s275] sm:%s267] %v276
                  %v278 = vld [vmem:[%s274 + $0x8] sm:%s267]
                  %279 = vst [vmem:[%s275 + $0x4] sm:%s267] %v278
                  %v280 = vld [vmem:[%s274 + $0x10] sm:%s267]
                  %281 = vst [vmem:[%s275 + $0x8] sm:%s267] %v280
                  %v282 = vld [vmem:[%s274 + $0x18] sm:%s267]
                  %283 = vst [vmem:[%s275 + $0xc] sm:%s267] %v282
                  %v284 = vld [vmem:[%s274 + $0x20] sm:%s267]
                  %285 = vst [vmem:[%s275 + $0x10] sm:%s267] %v284
                  %v286 = vld [vmem:[%s274 + $0x28] sm:%s267]
                  %287 = vst [vmem:[%s275 + $0x14] sm:%s267] %v286
                  %v288 = vld [vmem:[%s274 + $0x30] sm:%s267]
                  %289 = vst [vmem:[%s275 + $0x18] sm:%s267] %v288
                  %v290 = vld [vmem:[%s274 + $0x38] sm:%s267]
                  %291 = vst [vmem:[%s275 + $0x1c] sm:%s267] %v290
                $region75: #{tpu_custom_call.1} parent=62 // loop_footer
                  %s273 = sadd.s32 1, %s269
                $region76: #{tpu_custom_call.1} parent=62 // loop_footer_branch
                  %268 = sbr.rel target = $region72
                $region77: #{tpu_custom_call.1} parent=62 // loop_exit
                  _
              $region63: #{tpu_custom_call.1} parent=47 // pred_fallthru
                _
            $region48: #{tpu_custom_call.1} parent=43 // pred_fallthru
              _
            // Predicated region
            $region49: #{tpu_custom_call.1} parent=43 // pred_check
              _
            $region50: #{tpu_custom_call.1} parent=43 // pred_check_branch
              %229 = sbr.rel (0) target = $region52
            $region51: #{tpu_custom_call.1} parent=43 // pred_region
              %s231 = ssub.s32 16, 1
              loop: start=0, step=1, limit=1
              $region53: #{tpu_custom_call.1} parent=51 // loop_pre_header
                _
              $region54: #{tpu_custom_call.1} parent=51 // loop_header
                %s233 = sphi 0, %s237
                %p234 = scmp.ge.s32.totalorder %s233, 1
                %s238 = sphi %s223, %s223
                %s239 = sphi %s221, %s221
              $region55: #{tpu_custom_call.1} parent=51 // loop_header_branch
                %236 = sbr.rel (%p234) target = $region59
              $region56: #{tpu_custom_call.1} parent=51 // loop_body
                %v240 = vld [vmem:[%s238] sm:%s231]
                %241 = vst [vmem:[%s239] sm:%s231] %v240
                %v242 = vld [vmem:[%s238 + $0x8] sm:%s231]
                %243 = vst [vmem:[%s239 + $0x4] sm:%s231] %v242
                %v244 = vld [vmem:[%s238 + $0x10] sm:%s231]
                %245 = vst [vmem:[%s239 + $0x8] sm:%s231] %v244
                %v246 = vld [vmem:[%s238 + $0x18] sm:%s231]
                %247 = vst [vmem:[%s239 + $0xc] sm:%s231] %v246
                %v248 = vld [vmem:[%s238 + $0x20] sm:%s231]
                %249 = vst [vmem:[%s239 + $0x10] sm:%s231] %v248
                %v250 = vld [vmem:[%s238 + $0x28] sm:%s231]
                %251 = vst [vmem:[%s239 + $0x14] sm:%s231] %v250
                %v252 = vld [vmem:[%s238 + $0x30] sm:%s231]
                %253 = vst [vmem:[%s239 + $0x18] sm:%s231] %v252
                %v254 = vld [vmem:[%s238 + $0x38] sm:%s231]
                %255 = vst [vmem:[%s239 + $0x1c] sm:%s231] %v254
              $region57: #{tpu_custom_call.1} parent=51 // loop_footer
                %s237 = sadd.s32 1, %s233
              $region58: #{tpu_custom_call.1} parent=51 // loop_footer_branch
                %232 = sbr.rel target = $region54
              $region59: #{tpu_custom_call.1} parent=51 // loop_exit
                _
            $region52: #{tpu_custom_call.1} parent=43 // pred_fallthru
              _
          $region44: #{tpu_custom_call.1} parent=39 // pred_fallthru
            _
          %292 = vnop
        $region40: #{tpu_custom_call.1} parent=35 // pred_fallthru
          _
      $region36: #{tpu_custom_call.1} parent=5 // pred_fallthru
        _
      %p293 = scmp.le.s32.totalorder 1, %s13
      %p294 = scmp.lt.s32.totalorder %s13, 3
      %p295 = pnand %p293, %p294
      %p296 = pneg %p295
      // Predicated region
      $region78: #{tpu_custom_call.1} parent=5 // pred_check
        _
      $region79: #{tpu_custom_call.1} parent=5 // pred_check_branch
        %298 = sbr.rel (%p295) target = $region81
      $region80: #{tpu_custom_call.1} parent=5 // pred_region
        %s299 = ssub.s32 %s13, 1
        %s300 = sand.u32 %s26, 1
        %s301 = sand.u32 %s26, 1
        %s302 = smul.addr %s301, 32
        %s303 = scalar_lea.vmem [#allocation2], %s302
        // Predicated region
        $region82: #{tpu_custom_call.1} parent=80 // pred_check
          %p304 = pneg %p39
        $region83: #{tpu_custom_call.1} parent=80 // pred_check_branch
          %306 = sbr.rel (%p304) target = $region85
        $region84: #{tpu_custom_call.1} parent=80 // pred_region
          _
        $region85: #{tpu_custom_call.1} parent=80 // pred_fallthru
          _
        // Predicated region
        $region86: #{tpu_custom_call.1} parent=80 // pred_check
          %p307 = pneg %p81
        $region87: #{tpu_custom_call.1} parent=80 // pred_check_branch
          %309 = sbr.rel (%p307) target = $region89
        $region88: #{tpu_custom_call.1} parent=80 // pred_region
          %311 = dma.done [#allocation4], 4096
        $region89: #{tpu_custom_call.1} parent=80 // pred_fallthru
          _
        %s312 = sand.u32 %s26, 1
        %s313 = sand.u32 %s26, 1
        %s314 = smul.addr %s313, 32
        %s315 = scalar_lea.vmem [#allocation2], %s314
        %p316 = pneg %p39
        %p317 = pneg %p36
        %p318 = pneg %p60
        %p319 = pneg %p57
        %p320 = pneg %p81
        %p321 = pneg %p78
        %p322 = pneg %p102
        %p323 = pneg %p99
        %p324 = pneg %p123
        %p325 = pneg %p120
        %p326 = pneg %p144
        %p327 = pneg %p141
        %p328 = pneg %p170
        %p329 = pneg %p167
        %p330 = scmp.lt.s32.totalorder %s18, 1
        %s331 = scalar_select %p330, %s18, 1
        %s332 = smul.addr %s331, 8
        %s333 = scalar_lea.vmem %s6, %s332
        %p334 = scmp.lt.s32.totalorder %s18, 1
        %s335 = scalar_select %p334, %s18, 1
        %s336 = smul.addr %s335, 8
        %s337 = scalar_lea.vmem %s6, %s336
        %v339 = vld [vmem:[%s303] sm:$0xf]
        %v340 = vld [vmem:[%s303 + $0x4] sm:$0xf]
        %v341 = vld [vmem:[%s303 + $0x8] sm:$0xf]
        %v342 = vld [vmem:[%s303 + $0xc] sm:$0xf]
        %v343 = vld [vmem:[%s303 + $0x10] sm:$0xf]
        %v344 = vld [vmem:[%s303 + $0x14] sm:$0xf]
        %v345 = vld [vmem:[%s303 + $0x18] sm:$0xf]
        %v346 = vld [vmem:[%s303 + $0x1c] sm:$0xf]
        %v347 = vld [vmem:[%s1] sm:$0xff]
        %v348 = vld [vmem:[%s1 + $0x8] sm:$0xff]
        %v349 = vld [vmem:[%s3] sm:$0xf]
        %v351 = vperm.slane %v349, 0
        %v352 = vperm.slane %v349, 1
        %v353 = vperm.slane %v349, 2
        %v354 = vperm.slane %v349, 3
        %v367 = vunpack.c.l.b16 %v339
        %v368 = vunpack.c.l.b16 %v340
        %v369 = vunpack.c.l.b16 %v341
        %v370 = vunpack.c.l.b16 %v342
        %v371 = vunpack.c.l.b16 %v343
        %v372 = vunpack.c.l.b16 %v344
        %v373 = vunpack.c.l.b16 %v345
        %v374 = vunpack.c.l.b16 %v346
        %v375 = vpack.c.b16 %v368, %v367
        %v376 = vpack.c.b16 %v370, %v369
        %v377 = vpack.c.b16 %v372, %v371
        %v378 = vpack.c.b16 %v374, %v373
        %v381 = vunpack.c.l.b16 %v347
        %v382 = vunpack.c.h.b16 %v347
        %v383 = vunpack.c.l.b16 %v348
        %v384 = vunpack.c.h.b16 %v348
        %v385 = vpack.c.b16 %v381, %v381
        %v386 = vpack.c.b16 %v382, %v382
        %v387 = vpack.c.b16 %v383, %v383
        %v388 = vpack.c.b16 %v384, %v384
        %vm389 = vcmask 64512
        %v391 = vsel %vm389, %v375, 0
        %v394 = vsel %vm389, %v376, 0
        %v397 = vsel %vm389, %v377, 0
        %v400 = vsel %vm389, %v378, 0
        %vm402 = vcmask 1043456
        %v404 = vsel %vm402, %v385, 0
        %v407 = vsel %vm402, %v386, 0
        %v410 = vsel %vm402, %v387, 0
        %v413 = vsel %vm402, %v388, 0
        %415 = vmatpush.bf16.msra.mxu0 0
        %416 = vmatpush.bf16.msra.mxu0 0
        %417 = vmatpush.bf16.msra.mxu0 0
        %418 = vmatpush.bf16.msra.mxu0 0
        %419 = vmatpush.bf16.msra.mxu0 0
        %420 = vmatpush.bf16.msra.mxu0 0
        %421 = vmatpush.bf16.msra.mxu0 0
        %422 = vmatpush.bf16.msra.mxu0 %v404
        %423 = vmatmul.bf16.gmra.mxu0 %v391
        %v424 = vpop.f32.mrf.mxu0
        %v425 = vadd.f32 %v351, %v424
        %v426 = vpop.f32.mrf.mxu0
        %v427 = vadd.f32 %v351, %v426
        %428 = vmatmul.bf16.gmra.mxu0 %v394
        %v429 = vpop.f32.mrf.mxu0
        %v430 = vadd.f32 %v351, %v429
        %v431 = vpop.f32.mrf.mxu0
        %v432 = vadd.f32 %v351, %v431
        %433 = vmatmul.bf16.gmra.mxu0 %v397
        %v434 = vpop.f32.mrf.mxu0
        %v435 = vadd.f32 %v351, %v434
        %v436 = vpop.f32.mrf.mxu0
        %v437 = vadd.f32 %v351, %v436
        %438 = vmatmul.bf16.gmra.mxu0 %v400
        %v439 = vpop.f32.mrf.mxu0
        %v440 = vadd.f32 %v351, %v439
        %v441 = vpop.f32.mrf.mxu0
        %v442 = vadd.f32 %v351, %v441
        %443 = vdwg.mxu0
        %444 = vmatpush.bf16.msra.mxu0 0
        %445 = vmatpush.bf16.msra.mxu0 0
        %446 = vmatpush.bf16.msra.mxu0 0
        %447 = vmatpush.bf16.msra.mxu0 0
        %448 = vmatpush.bf16.msra.mxu0 0
        %449 = vmatpush.bf16.msra.mxu0 0
        %450 = vmatpush.bf16.msra.mxu0 0
        %451 = vmatpush.bf16.msra.mxu0 %v407
        %452 = vmatmul.bf16.gmra.mxu0 %v391
        %v453 = vpop.f32.mrf.mxu0
        %v454 = vadd.f32 %v352, %v453
        %v455 = vpop.f32.mrf.mxu0
        %v456 = vadd.f32 %v352, %v455
        %457 = vmatmul.bf16.gmra.mxu0 %v394
        %v458 = vpop.f32.mrf.mxu0
        %v459 = vadd.f32 %v352, %v458
        %v460 = vpop.f32.mrf.mxu0
        %v461 = vadd.f32 %v352, %v460
        %462 = vmatmul.bf16.gmra.mxu0 %v397
        %v463 = vpop.f32.mrf.mxu0
        %v464 = vadd.f32 %v352, %v463
        %v465 = vpop.f32.mrf.mxu0
        %v466 = vadd.f32 %v352, %v465
        %467 = vmatmul.bf16.gmra.mxu0 %v400
        %v468 = vpop.f32.mrf.mxu0
        %v469 = vadd.f32 %v352, %v468
        %v470 = vpop.f32.mrf.mxu0
        %v471 = vadd.f32 %v352, %v470
        %472 = vdwg.mxu0
        %473 = vmatpush.bf16.msra.mxu0 0
        %474 = vmatpush.bf16.msra.mxu0 0
        %475 = vmatpush.bf16.msra.mxu0 0
        %476 = vmatpush.bf16.msra.mxu0 0
        %477 = vmatpush.bf16.msra.mxu0 0
        %478 = vmatpush.bf16.msra.mxu0 0
        %479 = vmatpush.bf16.msra.mxu0 0
        %480 = vmatpush.bf16.msra.mxu0 %v410
        %481 = vmatmul.bf16.gmra.mxu0 %v391
        %v482 = vpop.f32.mrf.mxu0
        %v483 = vadd.f32 %v353, %v482
        %v484 = vpop.f32.mrf.mxu0
        %v485 = vadd.f32 %v353, %v484
        %486 = vmatmul.bf16.gmra.mxu0 %v394
        %v487 = vpop.f32.mrf.mxu0
        %v488 = vadd.f32 %v353, %v487
        %v489 = vpop.f32.mrf.mxu0
        %v490 = vadd.f32 %v353, %v489
        %491 = vmatmul.bf16.gmra.mxu0 %v397
        %v492 = vpop.f32.mrf.mxu0
        %v493 = vadd.f32 %v353, %v492
        %v494 = vpop.f32.mrf.mxu0
        %v495 = vadd.f32 %v353, %v494
        %496 = vmatmul.bf16.gmra.mxu0 %v400
        %v497 = vpop.f32.mrf.mxu0
        %v498 = vadd.f32 %v353, %v497
        %v499 = vpop.f32.mrf.mxu0
        %v500 = vadd.f32 %v353, %v499
        %501 = vdwg.mxu0
        %502 = vmatpush.bf16.msra.mxu0 0
        %503 = vmatpush.bf16.msra.mxu0 0
        %504 = vmatpush.bf16.msra.mxu0 0
        %505 = vmatpush.bf16.msra.mxu0 0
        %506 = vmatpush.bf16.msra.mxu0 0
        %507 = vmatpush.bf16.msra.mxu0 0
        %508 = vmatpush.bf16.msra.mxu0 0
        %509 = vmatpush.bf16.msra.mxu0 %v413
        %510 = vmatmul.bf16.gmra.mxu0 %v391
        %v511 = vpop.f32.mrf.mxu0
        %v512 = vadd.f32 %v354, %v511
        %v513 = vpop.f32.mrf.mxu0
        %v514 = vadd.f32 %v354, %v513
        %515 = vmatmul.bf16.gmra.mxu0 %v394
        %v516 = vpop.f32.mrf.mxu0
        %v517 = vadd.f32 %v354, %v516
        %v518 = vpop.f32.mrf.mxu0
        %v519 = vadd.f32 %v354, %v518
        %520 = vmatmul.bf16.gmra.mxu0 %v397
        %v521 = vpop.f32.mrf.mxu0
        %v522 = vadd.f32 %v354, %v521
        %v523 = vpop.f32.mrf.mxu0
        %v524 = vadd.f32 %v354, %v523
        %525 = vmatmul.bf16.gmra.mxu0 %v400
        %v526 = vpop.f32.mrf.mxu0
        %v527 = vadd.f32 %v354, %v526
        %v528 = vpop.f32.mrf.mxu0
        %v529 = vadd.f32 %v354, %v528
        %530 = vdwg.mxu0
        %v531 = vld [vmem:[#allocation3] sm:$0xff]
        %v532 = vld [vmem:[#allocation3 + $0x8] sm:$0xff]
        %v533 = vld [vmem:[#allocation3 + $0x10] sm:$0xff]
        %v534 = vld [vmem:[#allocation3 + $0x18] sm:$0xff]
        %v535 = vld [vmem:[#allocation3 + $0x20] sm:$0xff]
        %v536 = vld [vmem:[#allocation3 + $0x28] sm:$0xff]
        %v537 = vld [vmem:[#allocation3 + $0x30] sm:$0xff]
        %v538 = vld [vmem:[#allocation3 + $0x38] sm:$0xff]
        %v539 = vld [vmem:[#allocation3 + $0x40] sm:$0xff]
        %v540 = vld [vmem:[#allocation3 + $0x48] sm:$0xff]
        %v541 = vld [vmem:[#allocation3 + $0x50] sm:$0xff]
        %v542 = vld [vmem:[#allocation3 + $0x58] sm:$0xff]
        %v543 = vld [vmem:[#allocation3 + $0x60] sm:$0xff]
        %v544 = vld [vmem:[#allocation3 + $0x68] sm:$0xff]
        %v545 = vld [vmem:[#allocation3 + $0x70] sm:$0xff]
        %v546 = vld [vmem:[#allocation3 + $0x78] sm:$0xff]
        %v547 = vld [vmem:[#allocation3 + $0x80] sm:$0xff]
        %v548 = vld [vmem:[#allocation3 + $0x88] sm:$0xff]
        %v549 = vld [vmem:[#allocation3 + $0x90] sm:$0xff]
        %v550 = vld [vmem:[#allocation3 + $0x98] sm:$0xff]
        %v551 = vld [vmem:[#allocation3 + $0xa0] sm:$0xff]
        %v552 = vld [vmem:[#allocation3 + $0xa8] sm:$0xff]
        %v553 = vld [vmem:[#allocation3 + $0xb0] sm:$0xff]
        %v554 = vld [vmem:[#allocation3 + $0xb8] sm:$0xff]
        %v555 = vld [vmem:[#allocation3 + $0xc0] sm:$0xff]
        %v556 = vld [vmem:[#allocation3 + $0xc8] sm:$0xff]
        %v557 = vld [vmem:[#allocation3 + $0xd0] sm:$0xff]
        %v558 = vld [vmem:[#allocation3 + $0xd8] sm:$0xff]
        %v559 = vld [vmem:[#allocation3 + $0xe0] sm:$0xff]
        %v560 = vld [vmem:[#allocation3 + $0xe8] sm:$0xff]
        %v561 = vld [vmem:[#allocation3 + $0xf0] sm:$0xff]
        %v562 = vld [vmem:[#allocation3 + $0xf8] sm:$0xff]
        %v595 = vunpack.c.l.b16 %v531
        %v596 = vunpack.c.h.b16 %v531
        %v597 = vunpack.c.l.b16 %v532
        %v598 = vunpack.c.h.b16 %v532
        %v599 = vunpack.c.l.b16 %v533
        %v600 = vunpack.c.h.b16 %v533
        %v601 = vunpack.c.l.b16 %v534
        %v602 = vunpack.c.h.b16 %v534
        %v603 = vunpack.c.l.b16 %v535
        %v604 = vunpack.c.h.b16 %v535
        %v605 = vunpack.c.l.b16 %v536
        %v606 = vunpack.c.h.b16 %v536
        %v607 = vunpack.c.l.b16 %v537
        %v608 = vunpack.c.h.b16 %v537
        %v609 = vunpack.c.l.b16 %v538
        %v610 = vunpack.c.h.b16 %v538
        %v611 = vunpack.c.l.b16 %v539
        %v612 = vunpack.c.h.b16 %v539
        %v613 = vunpack.c.l.b16 %v540
        %v614 = vunpack.c.h.b16 %v540
        %v615 = vunpack.c.l.b16 %v541
        %v616 = vunpack.c.h.b16 %v541
        %v617 = vunpack.c.l.b16 %v542
        %v618 = vunpack.c.h.b16 %v542
        %v619 = vunpack.c.l.b16 %v543
        %v620 = vunpack.c.h.b16 %v543
        %v621 = vunpack.c.l.b16 %v544
        %v622 = vunpack.c.h.b16 %v544
        %v623 = vunpack.c.l.b16 %v545
        %v624 = vunpack.c.h.b16 %v545
        %v625 = vunpack.c.l.b16 %v546
        %v626 = vunpack.c.h.b16 %v546
        %v627 = vunpack.c.l.b16 %v547
        %v628 = vunpack.c.h.b16 %v547
        %v629 = vunpack.c.l.b16 %v548
        %v630 = vunpack.c.h.b16 %v548
        %v631 = vunpack.c.l.b16 %v549
        %v632 = vunpack.c.h.b16 %v549
        %v633 = vunpack.c.l.b16 %v550
        %v634 = vunpack.c.h.b16 %v550
        %v635 = vunpack.c.l.b16 %v551
        %v636 = vunpack.c.h.b16 %v551
        %v637 = vunpack.c.l.b16 %v552
        %v638 = vunpack.c.h.b16 %v552
        %v639 = vunpack.c.l.b16 %v553
        %v640 = vunpack.c.h.b16 %v553
        %v641 = vunpack.c.l.b16 %v554
        %v642 = vunpack.c.h.b16 %v554
        %v643 = vunpack.c.l.b16 %v555
        %v644 = vunpack.c.h.b16 %v555
        %v645 = vunpack.c.l.b16 %v556
        %v646 = vunpack.c.h.b16 %v556
        %v647 = vunpack.c.l.b16 %v557
        %v648 = vunpack.c.h.b16 %v557
        %v649 = vunpack.c.l.b16 %v558
        %v650 = vunpack.c.h.b16 %v558
        %v651 = vunpack.c.l.b16 %v559
        %v652 = vunpack.c.h.b16 %v559
        %v653 = vunpack.c.l.b16 %v560
        %v654 = vunpack.c.h.b16 %v560
        %v655 = vunpack.c.l.b16 %v561
        %v656 = vunpack.c.h.b16 %v561
        %v657 = vunpack.c.l.b16 %v562
        %v658 = vunpack.c.h.b16 %v562
        %v659 = vpack.c.b16 %v599, %v595
        %v660 = vpack.c.b16 %v600, %v596
        %v661 = vpack.c.b16 %v601, %v597
        %v662 = vpack.c.b16 %v602, %v598
        %v663 = vpack.c.b16 %v607, %v603
        %v664 = vpack.c.b16 %v608, %v604
        %v665 = vpack.c.b16 %v609, %v605
        %v666 = vpack.c.b16 %v610, %v606
        %v667 = vpack.c.b16 %v615, %v611
        %v668 = vpack.c.b16 %v616, %v612
        %v669 = vpack.c.b16 %v617, %v613
        %v670 = vpack.c.b16 %v618, %v614
        %v671 = vpack.c.b16 %v623, %v619
        %v672 = vpack.c.b16 %v624, %v620
        %v673 = vpack.c.b16 %v625, %v621
        %v674 = vpack.c.b16 %v626, %v622
        %v675 = vpack.c.b16 %v631, %v627
        %v676 = vpack.c.b16 %v632, %v628
        %v677 = vpack.c.b16 %v633, %v629
        %v678 = vpack.c.b16 %v634, %v630
        %v679 = vpack.c.b16 %v639, %v635
        %v680 = vpack.c.b16 %v640, %v636
        %v681 = vpack.c.b16 %v641, %v637
        %v682 = vpack.c.b16 %v642, %v638
        %v683 = vpack.c.b16 %v647, %v643
        %v684 = vpack.c.b16 %v648, %v644
        %v685 = vpack.c.b16 %v649, %v645
        %v686 = vpack.c.b16 %v650, %v646
        %v687 = vpack.c.b16 %v655, %v651
        %v688 = vpack.c.b16 %v656, %v652
        %v689 = vpack.c.b16 %v657, %v653
        %v690 = vpack.c.b16 %v658, %v654
        %723 = vmatpush.bf16.msra.mxu0 %v687
        %724 = vmatpush.bf16.msra.mxu0 %v683
        %725 = vmatpush.bf16.msra.mxu0 %v679
        %726 = vmatpush.bf16.msra.mxu0 %v675
        %727 = vmatpush.bf16.msra.mxu0 %v671
        %728 = vmatpush.bf16.msra.mxu0 %v667
        %729 = vmatpush.bf16.msra.mxu0 %v663
        %730 = vmatpush.bf16.msra.mxu0 %v659
        %731 = vmatmul.bf16.gmra.mxu0 0
        %v732 = vpop.f32.mrf.mxu0
        %v733 = vadd.f32 0.0, %v732
        %v734 = vpop.f32.mrf.mxu0
        %735 = vdwg.mxu0
        %736 = vmatpush.bf16.msra.mxu0 %v688
        %737 = vmatpush.bf16.msra.mxu0 %v684
        %738 = vmatpush.bf16.msra.mxu0 %v680
        %739 = vmatpush.bf16.msra.mxu0 %v676
        %740 = vmatpush.bf16.msra.mxu0 %v672
        %741 = vmatpush.bf16.msra.mxu0 %v668
        %742 = vmatpush.bf16.msra.mxu0 %v664
        %743 = vmatpush.bf16.msra.mxu0 %v660
        %744 = vmatmul.bf16.gmra.mxu0 0
        %v745 = vpop.f32.mrf.mxu0
        %v746 = vadd.f32 0.0, %v745
        %v747 = vpop.f32.mrf.mxu0
        %748 = vdwg.mxu0
        %749 = vmatpush.bf16.msra.mxu0 %v689
        %750 = vmatpush.bf16.msra.mxu0 %v685
        %751 = vmatpush.bf16.msra.mxu0 %v681
        %752 = vmatpush.bf16.msra.mxu0 %v677
        %753 = vmatpush.bf16.msra.mxu0 %v673
        %754 = vmatpush.bf16.msra.mxu0 %v669
        %755 = vmatpush.bf16.msra.mxu0 %v665
        %756 = vmatpush.bf16.msra.mxu0 %v661
        %757 = vmatmul.bf16.gmra.mxu0 0
        %v758 = vpop.f32.mrf.mxu0
        %v759 = vadd.f32 0.0, %v758
        %v760 = vpop.f32.mrf.mxu0
        %761 = vdwg.mxu0
        %762 = vmatpush.bf16.msra.mxu0 %v690
        %763 = vmatpush.bf16.msra.mxu0 %v686
        %764 = vmatpush.bf16.msra.mxu0 %v682
        %765 = vmatpush.bf16.msra.mxu0 %v678
        %766 = vmatpush.bf16.msra.mxu0 %v674
        %767 = vmatpush.bf16.msra.mxu0 %v670
        %768 = vmatpush.bf16.msra.mxu0 %v666
        %769 = vmatpush.bf16.msra.mxu0 %v662
        %770 = vmatmul.bf16.gmra.mxu0 0
        %v771 = vpop.f32.mrf.mxu0
        %v772 = vadd.f32 0.0, %v771
        %v773 = vpop.f32.mrf.mxu0
        %774 = vdwg.mxu0
        %v775 = vadd.f32 %v425, %v733
        %v776 = vadd.f32 %v454, %v746
        %v777 = vadd.f32 %v483, %v759
        %v778 = vadd.f32 %v512, %v772
        %v779 = vtanh.pop %v775
        %v780 = vtanh.pop %v776
        %v781 = vtanh.pop %v777
        %v782 = vtanh.pop %v778
        %v783 = vadd.f32 %v779, 1.0
        %v784 = vmul.f32 %v783, 0.5
        %v785 = vadd.f32 %v780, 1.0
        %v786 = vmul.f32 %v785, 0.5
        %v787 = vadd.f32 %v782, 1.0
        %v788 = vmul.f32 %v787, 0.5
        %v789 = vmul.f32 %v786, 0.0
        %v790 = vmul.f32 %v784, %v781
        %v791 = vadd.f32 %v789, %v790
        %v792 = vtanh.pop %v791
        %v793 = vmul.f32 %v788, %v792
        %v794 = vpack.c.bf16 %v793, %v793
        %795 = vmatpush.bf16.msra.mxu0 %v687
        %796 = vmatpush.bf16.msra.mxu0 %v683
        %797 = vmatpush.bf16.msra.mxu0 %v679
        %798 = vmatpush.bf16.msra.mxu0 %v675
        %799 = vmatpush.bf16.msra.mxu0 %v671
        %800 = vmatpush.bf16.msra.mxu0 %v667
        %801 = vmatpush.bf16.msra.mxu0 %v663
        %802 = vmatpush.bf16.msra.mxu0 %v659
        %803 = vmatmul.bf16.gmra.mxu0 %v794
        %v804 = vpop.f32.mrf.mxu0
        %v805 = vadd.f32 0.0, %v804
        %v806 = vpop.f32.mrf.mxu0
        %807 = vdwg.mxu0
        %808 = vmatpush.bf16.msra.mxu0 %v688
        %809 = vmatpush.bf16.msra.mxu0 %v684
        %810 = vmatpush.bf16.msra.mxu0 %v680
        %811 = vmatpush.bf16.msra.mxu0 %v676
        %812 = vmatpush.bf16.msra.mxu0 %v672
        %813 = vmatpush.bf16.msra.mxu0 %v668
        %814 = vmatpush.bf16.msra.mxu0 %v664
        %815 = vmatpush.bf16.msra.mxu0 %v660
        %816 = vmatmul.bf16.gmra.mxu0 %v794
        %v817 = vpop.f32.mrf.mxu0
        %v818 = vadd.f32 0.0, %v817
        %v819 = vpop.f32.mrf.mxu0
        %820 = vdwg.mxu0
        %821 = vmatpush.bf16.msra.mxu0 %v689
        %822 = vmatpush.bf16.msra.mxu0 %v685
        %823 = vmatpush.bf16.msra.mxu0 %v681
        %824 = vmatpush.bf16.msra.mxu0 %v677
        %825 = vmatpush.bf16.msra.mxu0 %v673
        %826 = vmatpush.bf16.msra.mxu0 %v669
        %827 = vmatpush.bf16.msra.mxu0 %v665
        %828 = vmatpush.bf16.msra.mxu0 %v661
        %829 = vmatmul.bf16.gmra.mxu0 %v794
        %v830 = vpop.f32.mrf.mxu0
        %v831 = vadd.f32 0.0, %v830
        %v832 = vpop.f32.mrf.mxu0
        %833 = vdwg.mxu0
        %834 = vmatpush.bf16.msra.mxu0 %v690
        %835 = vmatpush.bf16.msra.mxu0 %v686
        %836 = vmatpush.bf16.msra.mxu0 %v682
        %837 = vmatpush.bf16.msra.mxu0 %v678
        %838 = vmatpush.bf16.msra.mxu0 %v674
        %839 = vmatpush.bf16.msra.mxu0 %v670
        %840 = vmatpush.bf16.msra.mxu0 %v666
        %841 = vmatpush.bf16.msra.mxu0 %v662
        %842 = vmatmul.bf16.gmra.mxu0 %v794
        %v843 = vpop.f32.mrf.mxu0
        %v844 = vadd.f32 0.0, %v843
        %v845 = vpop.f32.mrf.mxu0
        %846 = vdwg.mxu0
        %v847 = vadd.f32 %v427, %v805
        %v848 = vadd.f32 %v456, %v818
        %v849 = vadd.f32 %v485, %v831
        %v850 = vadd.f32 %v514, %v844
        %v851 = vtanh.pop %v847
        %v852 = vtanh.pop %v848
        %v853 = vtanh.pop %v849
        %v854 = vtanh.pop %v850
        %v855 = vadd.f32 %v851, 1.0
        %v856 = vmul.f32 %v855, 0.5
        %v857 = vadd.f32 %v852, 1.0
        %v858 = vmul.f32 %v857, 0.5
        %v859 = vadd.f32 %v854, 1.0
        %v860 = vmul.f32 %v859, 0.5
        %v861 = vmul.f32 %v858, %v791
        %v862 = vmul.f32 %v856, %v853
        %v863 = vadd.f32 %v861, %v862
        %v864 = vtanh.pop %v863
        %v865 = vmul.f32 %v860, %v864
        %v866 = vpack.c.bf16 %v865, %v865
        %867 = vmatpush.bf16.msra.mxu0 %v687
        %868 = vmatpush.bf16.msra.mxu0 %v683
        %869 = vmatpush.bf16.msra.mxu0 %v679
        %870 = vmatpush.bf16.msra.mxu0 %v675
        %871 = vmatpush.bf16.msra.mxu0 %v671
        %872 = vmatpush.bf16.msra.mxu0 %v667
        %873 = vmatpush.bf16.msra.mxu0 %v663
        %874 = vmatpush.bf16.msra.mxu0 %v659
        %875 = vmatmul.bf16.gmra.mxu0 %v866
        %v876 = vpop.f32.mrf.mxu0
        %v877 = vadd.f32 0.0, %v876
        %v878 = vpop.f32.mrf.mxu0
        %879 = vdwg.mxu0
        %880 = vmatpush.bf16.msra.mxu0 %v688
        %881 = vmatpush.bf16.msra.mxu0 %v684
        %882 = vmatpush.bf16.msra.mxu0 %v680
        %883 = vmatpush.bf16.msra.mxu0 %v676
        %884 = vmatpush.bf16.msra.mxu0 %v672
        %885 = vmatpush.bf16.msra.mxu0 %v668
        %886 = vmatpush.bf16.msra.mxu0 %v664
        %887 = vmatpush.bf16.msra.mxu0 %v660
        %888 = vmatmul.bf16.gmra.mxu0 %v866
        %v889 = vpop.f32.mrf.mxu0
        %v890 = vadd.f32 0.0, %v889
        %v891 = vpop.f32.mrf.mxu0
        %892 = vdwg.mxu0
        %893 = vmatpush.bf16.msra.mxu0 %v689
        %894 = vmatpush.bf16.msra.mxu0 %v685
        %895 = vmatpush.bf16.msra.mxu0 %v681
        %896 = vmatpush.bf16.msra.mxu0 %v677
        %897 = vmatpush.bf16.msra.mxu0 %v673
        %898 = vmatpush.bf16.msra.mxu0 %v669
        %899 = vmatpush.bf16.msra.mxu0 %v665
        %900 = vmatpush.bf16.msra.mxu0 %v661
        %901 = vmatmul.bf16.gmra.mxu0 %v866
        %v902 = vpop.f32.mrf.mxu0
        %v903 = vadd.f32 0.0, %v902
        %v904 = vpop.f32.mrf.mxu0
        %905 = vdwg.mxu0
        %906 = vmatpush.bf16.msra.mxu0 %v690
        %907 = vmatpush.bf16.msra.mxu0 %v686
        %908 = vmatpush.bf16.msra.mxu0 %v682
        %909 = vmatpush.bf16.msra.mxu0 %v678
        %910 = vmatpush.bf16.msra.mxu0 %v674
        %911 = vmatpush.bf16.msra.mxu0 %v670
        %912 = vmatpush.bf16.msra.mxu0 %v666
        %913 = vmatpush.bf16.msra.mxu0 %v662
        %914 = vmatmul.bf16.gmra.mxu0 %v866
        %v915 = vpop.f32.mrf.mxu0
        %v916 = vadd.f32 0.0, %v915
        %v917 = vpop.f32.mrf.mxu0
        %918 = vdwg.mxu0
        %v919 = vadd.f32 %v430, %v877
        %v920 = vadd.f32 %v459, %v890
        %v921 = vadd.f32 %v488, %v903
        %v922 = vadd.f32 %v517, %v916
        %v923 = vtanh.pop %v919
        %v924 = vtanh.pop %v920
        %v925 = vtanh.pop %v921
        %v926 = vtanh.pop %v922
        %v927 = vadd.f32 %v923, 1.0
        %v928 = vmul.f32 %v927, 0.5
        %v929 = vadd.f32 %v924, 1.0
        %v930 = vmul.f32 %v929, 0.5
        %v931 = vadd.f32 %v926, 1.0
        %v932 = vmul.f32 %v931, 0.5
        %v933 = vmul.f32 %v930, %v863
        %v934 = vmul.f32 %v928, %v925
        %v935 = vadd.f32 %v933, %v934
        %v936 = vtanh.pop %v935
        %v937 = vmul.f32 %v932, %v936
        %v938 = vpack.c.bf16 %v937, %v937
        %939 = vmatpush.bf16.msra.mxu0 %v687
        %940 = vmatpush.bf16.msra.mxu0 %v683
        %941 = vmatpush.bf16.msra.mxu0 %v679
        %942 = vmatpush.bf16.msra.mxu0 %v675
        %943 = vmatpush.bf16.msra.mxu0 %v671
        %944 = vmatpush.bf16.msra.mxu0 %v667
        %945 = vmatpush.bf16.msra.mxu0 %v663
        %946 = vmatpush.bf16.msra.mxu0 %v659
        %947 = vmatmul.bf16.gmra.mxu0 %v938
        %v948 = vpop.f32.mrf.mxu0
        %v949 = vadd.f32 0.0, %v948
        %v950 = vpop.f32.mrf.mxu0
        %951 = vdwg.mxu0
        %952 = vmatpush.bf16.msra.mxu0 %v688
        %953 = vmatpush.bf16.msra.mxu0 %v684
        %954 = vmatpush.bf16.msra.mxu0 %v680
        %955 = vmatpush.bf16.msra.mxu0 %v676
        %956 = vmatpush.bf16.msra.mxu0 %v672
        %957 = vmatpush.bf16.msra.mxu0 %v668
        %958 = vmatpush.bf16.msra.mxu0 %v664
        %959 = vmatpush.bf16.msra.mxu0 %v660
        %960 = vmatmul.bf16.gmra.mxu0 %v938
        %v961 = vpop.f32.mrf.mxu0
        %v962 = vadd.f32 0.0, %v961
        %v963 = vpop.f32.mrf.mxu0
        %964 = vdwg.mxu0
        %965 = vmatpush.bf16.msra.mxu0 %v689
        %966 = vmatpush.bf16.msra.mxu0 %v685
        %967 = vmatpush.bf16.msra.mxu0 %v681
        %968 = vmatpush.bf16.msra.mxu0 %v677
        %969 = vmatpush.bf16.msra.mxu0 %v673
        %970 = vmatpush.bf16.msra.mxu0 %v669
        %971 = vmatpush.bf16.msra.mxu0 %v665
        %972 = vmatpush.bf16.msra.mxu0 %v661
        %973 = vmatmul.bf16.gmra.mxu0 %v938
        %v974 = vpop.f32.mrf.mxu0
        %v975 = vadd.f32 0.0, %v974
        %v976 = vpop.f32.mrf.mxu0
        %977 = vdwg.mxu0
        %978 = vmatpush.bf16.msra.mxu0 %v690
        %979 = vmatpush.bf16.msra.mxu0 %v686
        %980 = vmatpush.bf16.msra.mxu0 %v682
        %981 = vmatpush.bf16.msra.mxu0 %v678
        %982 = vmatpush.bf16.msra.mxu0 %v674
        %983 = vmatpush.bf16.msra.mxu0 %v670
        %984 = vmatpush.bf16.msra.mxu0 %v666
        %985 = vmatpush.bf16.msra.mxu0 %v662
        %986 = vmatmul.bf16.gmra.mxu0 %v938
        %v987 = vpop.f32.mrf.mxu0
        %v988 = vadd.f32 0.0, %v987
        %v989 = vpop.f32.mrf.mxu0
        %990 = vdwg.mxu0
        %v991 = vadd.f32 %v432, %v949
        %v992 = vadd.f32 %v461, %v962
        %v993 = vadd.f32 %v490, %v975
        %v994 = vadd.f32 %v519, %v988
        %v995 = vtanh.pop %v991
        %v996 = vtanh.pop %v992
        %v997 = vtanh.pop %v993
        %v998 = vtanh.pop %v994
        %v999 = vadd.f32 %v995, 1.0
        %v1000 = vmul.f32 %v999, 0.5
        %v1001 = vadd.f32 %v996, 1.0
        %v1002 = vmul.f32 %v1001, 0.5
        %v1003 = vadd.f32 %v998, 1.0
        %v1004 = vmul.f32 %v1003, 0.5
        %v1005 = vmul.f32 %v1002, %v935
        %v1006 = vmul.f32 %v1000, %v997
        %v1007 = vadd.f32 %v1005, %v1006
        %v1008 = vtanh.pop %v1007
        %v1009 = vmul.f32 %v1004, %v1008
        %v1010 = vpack.c.bf16 %v1009, %v1009
        %1011 = vmatpush.bf16.msra.mxu0 %v687
        %1012 = vmatpush.bf16.msra.mxu0 %v683
        %1013 = vmatpush.bf16.msra.mxu0 %v679
        %1014 = vmatpush.bf16.msra.mxu0 %v675
        %1015 = vmatpush.bf16.msra.mxu0 %v671
        %1016 = vmatpush.bf16.msra.mxu0 %v667
        %1017 = vmatpush.bf16.msra.mxu0 %v663
        %1018 = vmatpush.bf16.msra.mxu0 %v659
        %1019 = vmatmul.bf16.gmra.mxu0 %v1010
        %v1020 = vpop.f32.mrf.mxu0
        %v1021 = vadd.f32 0.0, %v1020
        %v1022 = vpop.f32.mrf.mxu0
        %1023 = vdwg.mxu0
        %1024 = vmatpush.bf16.msra.mxu0 %v688
        %1025 = vmatpush.bf16.msra.mxu0 %v684
        %1026 = vmatpush.bf16.msra.mxu0 %v680
        %1027 = vmatpush.bf16.msra.mxu0 %v676
        %1028 = vmatpush.bf16.msra.mxu0 %v672
        %1029 = vmatpush.bf16.msra.mxu0 %v668
        %1030 = vmatpush.bf16.msra.mxu0 %v664
        %1031 = vmatpush.bf16.msra.mxu0 %v660
        %1032 = vmatmul.bf16.gmra.mxu0 %v1010
        %v1033 = vpop.f32.mrf.mxu0
        %v1034 = vadd.f32 0.0, %v1033
        %v1035 = vpop.f32.mrf.mxu0
        %1036 = vdwg.mxu0
        %1037 = vmatpush.bf16.msra.mxu0 %v689
        %1038 = vmatpush.bf16.msra.mxu0 %v685
        %1039 = vmatpush.bf16.msra.mxu0 %v681
        %1040 = vmatpush.bf16.msra.mxu0 %v677
        %1041 = vmatpush.bf16.msra.mxu0 %v673
        %1042 = vmatpush.bf16.msra.mxu0 %v669
        %1043 = vmatpush.bf16.msra.mxu0 %v665
        %1044 = vmatpush.bf16.msra.mxu0 %v661
        %1045 = vmatmul.bf16.gmra.mxu0 %v1010
        %v1046 = vpop.f32.mrf.mxu0
        %v1047 = vadd.f32 0.0, %v1046
        %v1048 = vpop.f32.mrf.mxu0
        %1049 = vdwg.mxu0
        %1050 = vmatpush.bf16.msra.mxu0 %v690
        %1051 = vmatpush.bf16.msra.mxu0 %v686
        %1052 = vmatpush.bf16.msra.mxu0 %v682
        %1053 = vmatpush.bf16.msra.mxu0 %v678
        %1054 = vmatpush.bf16.msra.mxu0 %v674
        %1055 = vmatpush.bf16.msra.mxu0 %v670
        %1056 = vmatpush.bf16.msra.mxu0 %v666
        %1057 = vmatpush.bf16.msra.mxu0 %v662
        %1058 = vmatmul.bf16.gmra.mxu0 %v1010
        %v1059 = vpop.f32.mrf.mxu0
        %v1060 = vadd.f32 0.0, %v1059
        %v1061 = vpop.f32.mrf.mxu0
        %1062 = vdwg.mxu0
        %v1063 = vadd.f32 %v435, %v1021
        %v1064 = vadd.f32 %v464, %v1034
        %v1065 = vadd.f32 %v493, %v1047
        %v1066 = vadd.f32 %v522, %v1060
        %v1067 = vtanh.pop %v1063
        %v1068 = vtanh.pop %v1064
        %v1069 = vtanh.pop %v1065
        %v1070 = vtanh.pop %v1066
        %v1071 = vadd.f32 %v1067, 1.0
        %v1072 = vmul.f32 %v1071, 0.5
        %v1073 = vadd.f32 %v1068, 1.0
        %v1074 = vmul.f32 %v1073, 0.5
        %v1075 = vadd.f32 %v1070, 1.0
        %v1076 = vmul.f32 %v1075, 0.5
        %v1077 = vmul.f32 %v1074, %v1007
        %v1078 = vmul.f32 %v1072, %v1069
        %v1079 = vadd.f32 %v1077, %v1078
        %v1080 = vtanh.pop %v1079
        %v1081 = vmul.f32 %v1076, %v1080
        %v1082 = vpack.c.bf16 %v1081, %v1081
        %1083 = vmatpush.bf16.msra.mxu0 %v687
        %1084 = vmatpush.bf16.msra.mxu0 %v683
        %1085 = vmatpush.bf16.msra.mxu0 %v679
        %1086 = vmatpush.bf16.msra.mxu0 %v675
        %1087 = vmatpush.bf16.msra.mxu0 %v671
        %1088 = vmatpush.bf16.msra.mxu0 %v667
        %1089 = vmatpush.bf16.msra.mxu0 %v663
        %1090 = vmatpush.bf16.msra.mxu0 %v659
        %1091 = vmatmul.bf16.gmra.mxu0 %v1082
        %v1092 = vpop.f32.mrf.mxu0
        %v1093 = vadd.f32 0.0, %v1092
        %v1094 = vpop.f32.mrf.mxu0
        %1095 = vdwg.mxu0
        %1096 = vmatpush.bf16.msra.mxu0 %v688
        %1097 = vmatpush.bf16.msra.mxu0 %v684
        %1098 = vmatpush.bf16.msra.mxu0 %v680
        %1099 = vmatpush.bf16.msra.mxu0 %v676
        %1100 = vmatpush.bf16.msra.mxu0 %v672
        %1101 = vmatpush.bf16.msra.mxu0 %v668
        %1102 = vmatpush.bf16.msra.mxu0 %v664
        %1103 = vmatpush.bf16.msra.mxu0 %v660
        %1104 = vmatmul.bf16.gmra.mxu0 %v1082
        %v1105 = vpop.f32.mrf.mxu0
        %v1106 = vadd.f32 0.0, %v1105
        %v1107 = vpop.f32.mrf.mxu0
        %1108 = vdwg.mxu0
        %1109 = vmatpush.bf16.msra.mxu0 %v689
        %1110 = vmatpush.bf16.msra.mxu0 %v685
        %1111 = vmatpush.bf16.msra.mxu0 %v681
        %1112 = vmatpush.bf16.msra.mxu0 %v677
        %1113 = vmatpush.bf16.msra.mxu0 %v673
        %1114 = vmatpush.bf16.msra.mxu0 %v669
        %1115 = vmatpush.bf16.msra.mxu0 %v665
        %1116 = vmatpush.bf16.msra.mxu0 %v661
        %1117 = vmatmul.bf16.gmra.mxu0 %v1082
        %v1118 = vpop.f32.mrf.mxu0
        %v1119 = vadd.f32 0.0, %v1118
        %v1120 = vpop.f32.mrf.mxu0
        %1121 = vdwg.mxu0
        %1122 = vmatpush.bf16.msra.mxu0 %v690
        %1123 = vmatpush.bf16.msra.mxu0 %v686
        %1124 = vmatpush.bf16.msra.mxu0 %v682
        %1125 = vmatpush.bf16.msra.mxu0 %v678
        %1126 = vmatpush.bf16.msra.mxu0 %v674
        %1127 = vmatpush.bf16.msra.mxu0 %v670
        %1128 = vmatpush.bf16.msra.mxu0 %v666
        %1129 = vmatpush.bf16.msra.mxu0 %v662
        %1130 = vmatmul.bf16.gmra.mxu0 %v1082
        %v1131 = vpop.f32.mrf.mxu0
        %v1132 = vadd.f32 0.0, %v1131
        %v1133 = vpop.f32.mrf.mxu0
        %1134 = vdwg.mxu0
        %v1135 = vadd.f32 %v437, %v1093
        %v1136 = vadd.f32 %v466, %v1106
        %v1137 = vadd.f32 %v495, %v1119
        %v1138 = vadd.f32 %v524, %v1132
        %v1139 = vtanh.pop %v1135
        %v1140 = vtanh.pop %v1136
        %v1141 = vtanh.pop %v1137
        %v1142 = vtanh.pop %v1138
        %v1143 = vadd.f32 %v1139, 1.0
        %v1144 = vmul.f32 %v1143, 0.5
        %v1145 = vadd.f32 %v1140, 1.0
        %v1146 = vmul.f32 %v1145, 0.5
        %v1147 = vadd.f32 %v1142, 1.0
        %v1148 = vmul.f32 %v1147, 0.5
        %v1149 = vmul.f32 %v1146, %v1079
        %v1150 = vmul.f32 %v1144, %v1141
        %v1151 = vadd.f32 %v1149, %v1150
        %v1152 = vtanh.pop %v1151
        %v1153 = vmul.f32 %v1148, %v1152
        %v1154 = vpack.c.bf16 %v1153, %v1153
        %1155 = vmatpush.bf16.msra.mxu0 %v687
        %1156 = vmatpush.bf16.msra.mxu0 %v683
        %1157 = vmatpush.bf16.msra.mxu0 %v679
        %1158 = vmatpush.bf16.msra.mxu0 %v675
        %1159 = vmatpush.bf16.msra.mxu0 %v671
        %1160 = vmatpush.bf16.msra.mxu0 %v667
        %1161 = vmatpush.bf16.msra.mxu0 %v663
        %1162 = vmatpush.bf16.msra.mxu0 %v659
        %1163 = vmatmul.bf16.gmra.mxu0 %v1154
        %v1164 = vpop.f32.mrf.mxu0
        %v1165 = vadd.f32 0.0, %v1164
        %v1166 = vpop.f32.mrf.mxu0
        %1167 = vdwg.mxu0
        %1168 = vmatpush.bf16.msra.mxu0 %v688
        %1169 = vmatpush.bf16.msra.mxu0 %v684
        %1170 = vmatpush.bf16.msra.mxu0 %v680
        %1171 = vmatpush.bf16.msra.mxu0 %v676
        %1172 = vmatpush.bf16.msra.mxu0 %v672
        %1173 = vmatpush.bf16.msra.mxu0 %v668
        %1174 = vmatpush.bf16.msra.mxu0 %v664
        %1175 = vmatpush.bf16.msra.mxu0 %v660
        %1176 = vmatmul.bf16.gmra.mxu0 %v1154
        %v1177 = vpop.f32.mrf.mxu0
        %v1178 = vadd.f32 0.0, %v1177
        %v1179 = vpop.f32.mrf.mxu0
        %1180 = vdwg.mxu0
        %1181 = vmatpush.bf16.msra.mxu0 %v689
        %1182 = vmatpush.bf16.msra.mxu0 %v685
        %1183 = vmatpush.bf16.msra.mxu0 %v681
        %1184 = vmatpush.bf16.msra.mxu0 %v677
        %1185 = vmatpush.bf16.msra.mxu0 %v673
        %1186 = vmatpush.bf16.msra.mxu0 %v669
        %1187 = vmatpush.bf16.msra.mxu0 %v665
        %1188 = vmatpush.bf16.msra.mxu0 %v661
        %1189 = vmatmul.bf16.gmra.mxu0 %v1154
        %v1190 = vpop.f32.mrf.mxu0
        %v1191 = vadd.f32 0.0, %v1190
        %v1192 = vpop.f32.mrf.mxu0
        %1193 = vdwg.mxu0
        %1194 = vmatpush.bf16.msra.mxu0 %v690
        %1195 = vmatpush.bf16.msra.mxu0 %v686
        %1196 = vmatpush.bf16.msra.mxu0 %v682
        %1197 = vmatpush.bf16.msra.mxu0 %v678
        %1198 = vmatpush.bf16.msra.mxu0 %v674
        %1199 = vmatpush.bf16.msra.mxu0 %v670
        %1200 = vmatpush.bf16.msra.mxu0 %v666
        %1201 = vmatpush.bf16.msra.mxu0 %v662
        %1202 = vmatmul.bf16.gmra.mxu0 %v1154
        %v1203 = vpop.f32.mrf.mxu0
        %v1204 = vadd.f32 0.0, %v1203
        %v1205 = vpop.f32.mrf.mxu0
        %1206 = vdwg.mxu0
        %v1207 = vadd.f32 %v440, %v1165
        %v1208 = vadd.f32 %v469, %v1178
        %v1209 = vadd.f32 %v498, %v1191
        %v1210 = vadd.f32 %v527, %v1204
        %v1211 = vtanh.pop %v1207
        %v1212 = vtanh.pop %v1208
        %v1213 = vtanh.pop %v1209
        %v1214 = vtanh.pop %v1210
        %v1215 = vadd.f32 %v1211, 1.0
        %v1216 = vmul.f32 %v1215, 0.5
        %v1217 = vadd.f32 %v1212, 1.0
        %v1218 = vmul.f32 %v1217, 0.5
        %v1219 = vadd.f32 %v1214, 1.0
        %v1220 = vmul.f32 %v1219, 0.5
        %v1221 = vmul.f32 %v1218, %v1151
        %v1222 = vmul.f32 %v1216, %v1213
        %v1223 = vadd.f32 %v1221, %v1222
        %v1224 = vtanh.pop %v1223
        %v1225 = vmul.f32 %v1220, %v1224
        %v1226 = vpack.c.bf16 %v1225, %v1225
        %1227 = vmatpush.bf16.msra.mxu0 %v687
        %1228 = vmatpush.bf16.msra.mxu0 %v683
        %1229 = vmatpush.bf16.msra.mxu0 %v679
        %1230 = vmatpush.bf16.msra.mxu0 %v675
        %1231 = vmatpush.bf16.msra.mxu0 %v671
        %1232 = vmatpush.bf16.msra.mxu0 %v667
        %1233 = vmatpush.bf16.msra.mxu0 %v663
        %1234 = vmatpush.bf16.msra.mxu0 %v659
        %1235 = vmatmul.bf16.gmra.mxu0 %v1226
        %v1236 = vpop.f32.mrf.mxu0
        %v1237 = vadd.f32 0.0, %v1236
        %v1238 = vpop.f32.mrf.mxu0
        %1239 = vdwg.mxu0
        %1240 = vmatpush.bf16.msra.mxu0 %v688
        %1241 = vmatpush.bf16.msra.mxu0 %v684
        %1242 = vmatpush.bf16.msra.mxu0 %v680
        %1243 = vmatpush.bf16.msra.mxu0 %v676
        %1244 = vmatpush.bf16.msra.mxu0 %v672
        %1245 = vmatpush.bf16.msra.mxu0 %v668
        %1246 = vmatpush.bf16.msra.mxu0 %v664
        %1247 = vmatpush.bf16.msra.mxu0 %v660
        %1248 = vmatmul.bf16.gmra.mxu0 %v1226
        %v1249 = vpop.f32.mrf.mxu0
        %v1250 = vadd.f32 0.0, %v1249
        %v1251 = vpop.f32.mrf.mxu0
        %1252 = vdwg.mxu0
        %1253 = vmatpush.bf16.msra.mxu0 %v689
        %1254 = vmatpush.bf16.msra.mxu0 %v685
        %1255 = vmatpush.bf16.msra.mxu0 %v681
        %1256 = vmatpush.bf16.msra.mxu0 %v677
        %1257 = vmatpush.bf16.msra.mxu0 %v673
        %1258 = vmatpush.bf16.msra.mxu0 %v669
        %1259 = vmatpush.bf16.msra.mxu0 %v665
        %1260 = vmatpush.bf16.msra.mxu0 %v661
        %1261 = vmatmul.bf16.gmra.mxu0 %v1226
        %v1262 = vpop.f32.mrf.mxu0
        %v1263 = vadd.f32 0.0, %v1262
        %v1264 = vpop.f32.mrf.mxu0
        %1265 = vdwg.mxu0
        %1266 = vmatpush.bf16.msra.mxu0 %v690
        %1267 = vmatpush.bf16.msra.mxu0 %v686
        %1268 = vmatpush.bf16.msra.mxu0 %v682
        %1269 = vmatpush.bf16.msra.mxu0 %v678
        %1270 = vmatpush.bf16.msra.mxu0 %v674
        %1271 = vmatpush.bf16.msra.mxu0 %v670
        %1272 = vmatpush.bf16.msra.mxu0 %v666
        %1273 = vmatpush.bf16.msra.mxu0 %v662
        %1274 = vmatmul.bf16.gmra.mxu0 %v1226
        %v1275 = vpop.f32.mrf.mxu0
        %v1276 = vadd.f32 0.0, %v1275
        %v1277 = vpop.f32.mrf.mxu0
        %1278 = vdwg.mxu0
        %v1279 = vadd.f32 %v442, %v1237
        %v1280 = vadd.f32 %v471, %v1250
        %v1281 = vadd.f32 %v500, %v1263
        %v1282 = vadd.f32 %v529, %v1276
        %v1283 = vtanh.pop %v1279
        %v1284 = vtanh.pop %v1280
        %v1285 = vtanh.pop %v1281
        %v1286 = vtanh.pop %v1282
        %v1287 = vadd.f32 %v1283, 1.0
        %v1288 = vmul.f32 %v1287, 0.5
        %v1289 = vadd.f32 %v1284, 1.0
        %v1290 = vmul.f32 %v1289, 0.5
        %v1291 = vadd.f32 %v1286, 1.0
        %v1292 = vmul.f32 %v1291, 0.5
        %v1293 = vmul.f32 %v1290, %v1223
        %v1294 = vmul.f32 %v1288, %v1285
        %v1295 = vadd.f32 %v1293, %v1294
        %v1296 = vtanh.pop %v1295
        %v1297 = vmul.f32 %v1292, %v1296
        %v1298 = vld [vmem:[%s4] sm:$0xff]
        %v1299 = vld [vmem:[%s4 + $0x8] sm:$0xff]
        %v1300 = vld [vmem:[%s4 + $0x10] sm:$0xff]
        %v1301 = vld [vmem:[%s4 + $0x18] sm:$0xff]
        %v1302 = vld [vmem:[%s4 + $0x20] sm:$0xff]
        %v1303 = vld [vmem:[%s4 + $0x28] sm:$0xff]
        %v1304 = vld [vmem:[%s4 + $0x30] sm:$0xff]
        %v1305 = vld [vmem:[%s4 + $0x38] sm:$0xff]
        %v1306 = vld [vmem:[%s4 + $0x40] sm:$0xff]
        %v1307 = vld [vmem:[%s4 + $0x48] sm:$0xff]
        %v1308 = vld [vmem:[%s4 + $0x50] sm:$0xff]
        %v1309 = vld [vmem:[%s4 + $0x58] sm:$0xff]
        %v1310 = vld [vmem:[%s4 + $0x60] sm:$0xff]
        %v1311 = vld [vmem:[%s4 + $0x68] sm:$0xff]
        %v1312 = vld [vmem:[%s4 + $0x70] sm:$0xff]
        %v1313 = vld [vmem:[%s4 + $0x78] sm:$0xff]
        %v1314 = vld [vmem:[%s5] sm:$0x1]
        %v1316 = vperm.slane %v1314, 0
        %1318 = vmatpush.msra.mxu0 %v1313
        %1319 = vmatpush.msra.mxu0 %v1312
        %1320 = vmatpush.msra.mxu0 %v1311
        %1321 = vmatpush.msra.mxu0 %v1310
        %1322 = vmatpush.msra.mxu0 %v1309
        %1323 = vmatpush.msra.mxu0 %v1308
        %1324 = vmatpush.msra.mxu0 %v1307
        %1325 = vmatpush.msra.mxu0 %v1306
        %1326 = vmatpush.msra.mxu0 %v1305
        %1327 = vmatpush.msra.mxu0 %v1304
        %1328 = vmatpush.msra.mxu0 %v1303
        %1329 = vmatpush.msra.mxu0 %v1302
        %1330 = vmatpush.msra.mxu0 %v1301
        %1331 = vmatpush.msra.mxu0 %v1300
        %1332 = vmatpush.msra.mxu0 %v1299
        %1333 = vmatpush.msra.mxu0 %v1298
        %1334 = vmatmul.f32.gmra.mxu0 %v1297
        %v1335 = vpop.f32.mrf.mxu0
        %v1336 = vadd.f32 %v1316, %v1335
        %1337 = vdwg.mxu0
        %1338 = vst.msk [vmem:[%s337] sm:$0xff] %vm389, %v1336
        %p1339 = scmp.lt.s32.totalorder %s18, 1
        %s1340 = scalar_select %p1339, %s18, 1
        %s1341 = smul.addr %s1340, 8
        %s1342 = scalar_lea.vmem %s6, %s1341
        // Predicated region
        $region90: #{tpu_custom_call.1} parent=80 // pred_check
          %p1343 = pneg %p167
        $region91: #{tpu_custom_call.1} parent=80 // pred_check_branch
          %1345 = sbr.rel (%p1343) target = $region93
        $region92: #{tpu_custom_call.1} parent=80 // pred_region
          _
        $region93: #{tpu_custom_call.1} parent=80 // pred_fallthru
          _
      $region81: #{tpu_custom_call.1} parent=5 // pred_fallthru
        _
      %p1346 = scmp.le.s32.totalorder 2, %s13
      // Predicated region
      $region94: #{tpu_custom_call.1} parent=5 // pred_check
        %p1347 = pneg %p1346
      $region95: #{tpu_custom_call.1} parent=5 // pred_check_branch
        %1349 = sbr.rel (%p1347) target = $region97
      $region96: #{tpu_custom_call.1} parent=5 // pred_region
        %s1350 = ssub.s32 %s13, 2
        // Predicated region
        $region98: #{tpu_custom_call.1} parent=96 // pred_check
          %p1351 = pneg %p173
        $region99: #{tpu_custom_call.1} parent=96 // pred_check_branch
          %1353 = sbr.rel (%p1351) target = $region101
        $region100: #{tpu_custom_call.1} parent=96 // pred_region
          %p1354 = scmp.lt.s32.totalorder %s19, 1
          %s1355 = scalar_select %p1354, %s19, 1
          %s1356 = smul.addr %s1355, 8
          %s1357 = scalar_lea.vmem %s6, %s1356
        $region101: #{tpu_custom_call.1} parent=96 // pred_fallthru
          _
      $region97: #{tpu_custom_call.1} parent=5 // pred_fallthru
        _
    $region6: #{tpu_custom_call.1} parent=1 // loop_footer
      %s17 = sadd.s32 1, %s13
    $region7: #{tpu_custom_call.1} parent=1 // loop_footer_branch
      %12 = sbr.rel target = $region3
    $region8: #{tpu_custom_call.1} parent=1 // loop_exit
      _
    %1358 = vsyncpa [#allocation4], 1
    %s1359 = scalar_lea.sflag [#allocation4], 1
    %1360 = vsyncpa %s1359, 1

</llo_original>
